<compile_context>
chip_gen: v7x
topology: tpu7x:2x2x1
jax: 0.10.0
libtpu: 0.0.40
codegen_flags: <defaults>
</compile_context>

<pallas_src>
import functools

import jax
import jax.numpy as jnp
from jax.experimental import pallas as pl
from jax.experimental.pallas import tpu as pltpu

# ----------------------------- config ---------------------------------------
B = 2          # batch of (target, graph, picked) states
N = 16         # total_nodes
F = 16         # node feature dim
D = 32         # embed_dim
H = 32         # mlp_hidden
MAX_LV = 1     # rounds of message passing


# ----------------------------- kernel ---------------------------------------
def qnet_kernel(tgt_ref, pick_ref,                    # scalar-prefetch (SMEM)
                x_ref, adj_ref,                       # hoisted projection, per-graph adj
                bp_ref, wc_ref, bc_ref,               # bias_picked, conv_params
                w1n_ref, w1g_ref, b1_ref,             # linear_1 split into node/graph parts
                wo_ref, bo_ref,                       # linear_out
                out_ref,                              # (GB, 1, N) lane-dense q-values
                h_scratch,                            # (N, D) VMEM scratch
                *, gb):
    pid = pl.program_id(0)

    x_base = x_ref[...]                               # (N, D) shared projection (hoisted)
    b_pick = bp_ref[...]
    wc = wc_ref[...]
    bc = bc_ref[...]
    w1n = w1n_ref[...]
    w1g = w1g_ref[...]
    b1 = b1_ref[...]
    wo = wo_ref[...]
    bo = bo_ref[...]
    row_ids = jax.lax.broadcasted_iota(jnp.int32, (N, 1), 0)

    for j in range(gb):                               # static unroll over graphs in this step
        g = pid * gb + j
        tgt = tgt_ref[g]
        pick = pick_ref[g]                            # -1 => no picked node
        adj = adj_ref[j]                              # (N, N) row-normalized

        # node_embed = x_base + one_hot(picked) * bias_picked   (no-op when pick < 0)
        pick_mask = (row_ids == pick).astype(jnp.float32)        # (N, 1)
        x = x_base + pick_mask * b_pick                          # input_message
        h = jnp.maximum(x, 0.0)                                  # relu

        # message passing: h = relu(conv(adj @ h) + input_message)
        for _ in range(MAX_LV):
            pooled = jnp.dot(adj, h, preferred_element_type=jnp.float32)      # (N, D)
            h = jnp.maximum(
                jnp.dot(pooled, wc, preferred_element_type=jnp.float32) + bc + x,
                0.0)

        # target_embed = h[target]: dynamic sublane slice from VMEM scratch
        h_scratch[...] = h
        target_embed = h_scratch[pl.ds(tgt, 1), :]               # (1, D)

        # graph_embed = mean over all nodes (region is None)
        graph_embed = jnp.mean(h, axis=0, keepdims=True)         # (1, D)

        # embed_s_a = cat([h, graph_embed.repeat]) @ W1 + b1  (concat-matmul split)
        hid = jnp.maximum(
            jnp.dot(h, w1n, preferred_element_type=jnp.float32)
            + jnp.dot(graph_embed, w1g, preferred_element_type=jnp.float32)
            + b1, 0.0)                                           # (N, H)

        raw = jnp.dot(hid, wo, preferred_element_type=jnp.float32) + bo       # (N, D)

        # bilin_q head as a lane-dense row: (1, N) = target_embed @ raw^T
        pred_row = jax.lax.dot_general(
            target_embed, raw, (((1,), (1,)), ((), ())),
            preferred_element_type=jnp.float32)                  # (1, N)
        out_ref[j] = pred_row


# ----------------------------- wrapper ---------------------------------------
def _graphs_per_step():
    """Graphs processed per grid step.

    v7x has 2 TensorCores/chip: keep one graph per (parallel) grid step so both
    cores get work. Single-TC chips (v5e/v6e): collapse the grid to one step
    and stack the graphs to amortize per-step pipeline overhead.
    """
    try:
        kind = jax.devices()[0].device_kind.lower()
    except Exception:
        kind = ""
    n_cores = 2 if ("v7" in kind or "7x" in kind) else 1
    gb = max(1, B // n_cores)
    while B % gb:                                     # keep the grid exact
        gb -= 1
    return gb


def qnet_forward(targets, picked, features, adj_norm, params):
    (w_n2l, b_n2l, b_pick, wc, bc, w1, b1, wo, bo) = params

    # Hoist the graph-invariant feature projection out of the kernel.
    x_base = features @ w_n2l + b_n2l                 # (N, D)
    # Split the concat-matmul weight in the wrapper (no in-kernel slicing).
    w1n, w1g = w1[:D], w1[D:]                         # (D, H), (D, H)

    gb = _graphs_per_step()
    grid = (B // gb,)

    full = lambda shp: pl.BlockSpec(shp, lambda b, t, p: (0,) * len(shp))
    grid_spec = pltpu.PrefetchScalarGridSpec(
        num_scalar_prefetch=2,
        grid=grid,
        in_specs=[
            full((N, D)),                                         # x_base (shared)
            pl.BlockSpec((gb, N, N), lambda b, t, p: (b, 0, 0)),  # adj per step
            full((1, D)),                                         # bias_picked
            full((D, D)), full((1, D)),                           # conv_params
            full((D, H)), full((D, H)), full((1, H)),             # linear_1 (split)
            full((H, D)), full((1, D)),                           # linear_out
        ],
        out_specs=pl.BlockSpec((gb, 1, N), lambda b, t, p: (b, 0, 0)),
        scratch_shapes=[pltpu.VMEM((N, D), jnp.float32)],
    )

    flops_per_graph = (2 * (N * N * D + N * D * D) * MAX_LV
                       + 2 * (N * D * H + D * H + N * H * D + D * N))
    bytes_accessed = 4 * (N * D + B * N * N + D + D * D + D
                          + 2 * D * H + H + H * D + D + B * N) + 8 * B

    out = pl.pallas_call(
        functools.partial(qnet_kernel, gb=gb),
        out_shape=jax.ShapeDtypeStruct((B, 1, N), jnp.float32),
        grid_spec=grid_spec,
        compiler_params=pltpu.CompilerParams(dimension_semantics=("parallel",)),
        cost_estimate=pl.CostEstimate(flops=B * flops_per_graph,
                                      transcendentals=0,
                                      bytes_accessed=bytes_accessed),
    )(targets, picked, x_base, adj_norm, b_pick, wc, bc, w1n, w1g, b1, wo, bo)

    return jnp.transpose(out, (0, 2, 1))              # lane-dense (B,1,N) -> (B,N,1)


# ------------------------- plain-JAX reference --------------------------------
def qnet_reference(targets, picked, features, adj_norm, params):
    (w_n2l, b_n2l, b_pick, wc, bc, w1, b1, wo, bo) = params
    preds = []
    for i in range(B):
        x = features @ w_n2l + b_n2l
        if int(picked[i]) >= 0:
            x = x.at[int(picked[i])].add(b_pick[0])
        input_message = x
        h = jnp.maximum(input_message, 0.0)
        for _ in range(MAX_LV):
            pooled = adj_norm[i] @ h
            h = jnp.maximum(pooled @ wc + bc + input_message, 0.0)
        target_embed = h[int(targets[i])][:, None]            # (D, 1)
        graph_embed = jnp.mean(h, axis=0, keepdims=True)       # (1, D)
        esa = jnp.concatenate([h, jnp.broadcast_to(graph_embed, h.shape)], axis=1)
        hid = jnp.maximum(esa @ w1 + b1, 0.0)
        raw = hid @ wo + bo
        preds.append(raw @ target_embed)                       # (N, 1)
    return jnp.stack(preds, axis=0)


# ----------------------------- param init ------------------------------------
def glorot(key, shape, fan_in, fan_out):
    limit = (6.0 / (fan_in + fan_out)) ** 0.5
    return jax.random.uniform(key, shape, jnp.float32, -limit, limit)


def init_params(key):
    ks = jax.random.split(key, 8)
    # Parameters (glorot_uniform), Linear biases zero, as in weights_init()
    w_n2l = glorot(ks[0], (F, D), F, D)
    b_n2l = glorot(ks[1], (1, D), D, D)        # 1-D param -> fan_in=fan_out=prod
    b_pick = glorot(ks[2], (1, D), 1, D)
    # nn.Linear weights are (out, in) in torch; transpose to (in, out) for x @ W
    wc = glorot(ks[3], (D, D), D, D).T
    bc = jnp.zeros((1, D), jnp.float32)
    w1 = glorot(ks[4], (H, 2 * D), H, 2 * D).T
    b1 = jnp.zeros((1, H), jnp.float32)
    wo = glorot(ks[5], (D, H), D, H).T
    bo = jnp.zeros((1, D), jnp.float32)
    return (w_n2l, b_n2l, b_pick, wc, bc, w1, b1, wo, bo)


# ----------------------------- main ------------------------------------------
if __name__ == "__main__":
    key = jax.random.PRNGKey(0)
    k_par, k_feat, k_adj, k_tgt = jax.random.split(key, 4)

    params = init_params(k_par)
    features = jax.random.normal(k_feat, (N, F), jnp.float32)

    # Per-graph dense symmetric adjacency, row-normalized (mean_field).
    # TODO(synk): GraphNormTool / get_extra_adj are not provided; adjacency
    #             normalization is done here in glue as D^{-1} A.
    a = (jax.random.uniform(k_adj, (B, N, N)) > 0.7).astype(jnp.float32)
    a = jnp.maximum(a, jnp.swapaxes(a, 1, 2))
    a = a * (1.0 - jnp.eye(N)[None])
    deg = jnp.sum(a, axis=-1, keepdims=True)
    adj_norm = a / jnp.maximum(deg, 1.0)

    targets = jnp.array([3, 7], jnp.int32)
    picked = jnp.array([5, -1], jnp.int32)     # -1 => no picked node for graph 1

    out = qnet_forward(targets, picked, features, adj_norm, params)
    out = jax.block_until_ready(out)

    ref = qnet_reference(targets, picked, features, adj_norm, params)
    assert out.shape == (B, N, 1)
    assert jnp.allclose(out, ref, atol=1e-4, rtol=1e-4), (out, ref)

    print("KERNEL_OK")
</pallas_src>

<mosaic_0001>
module attributes {stable_mosaic.version = 11 : i64} {
  func.func @qnet_kernel(%arg0: i32, %arg1: memref<2xi32, #tpu.memory_space<smem>>, %arg2: memref<2xi32, #tpu.memory_space<smem>>, %arg3: memref<16x32xf32, #tpu.memory_space<vmem>>, %arg4: memref<2x16x16xf32, #tpu.memory_space<vmem>>, %arg5: memref<1x32xf32, #tpu.memory_space<vmem>>, %arg6: memref<32x32xf32, #tpu.memory_space<vmem>>, %arg7: memref<1x32xf32, #tpu.memory_space<vmem>>, %arg8: memref<32x32xf32, #tpu.memory_space<vmem>>, %arg9: memref<32x32xf32, #tpu.memory_space<vmem>>, %arg10: memref<1x32xf32, #tpu.memory_space<vmem>>, %arg11: memref<32x32xf32, #tpu.memory_space<vmem>>, %arg12: memref<1x32xf32, #tpu.memory_space<vmem>>, %arg13: memref<2x1x16xf32, #tpu.memory_space<vmem>>, %arg14: memref<16x32xf32, #tpu.memory_space<vmem>>) attributes {dimension_semantics = [#tpu.dimension_semantics<parallel>], iteration_bounds = array<i64: 1>, scalar_prefetch = 2 : i64, scratch_operands = 1 : i64, tpu.core_type = #tpu.core_type<tc>, window_params = [{pipeline_mode = #tpu.pipeline_mode<synchronous>, transform_indices = @transform_0, window_bounds = array<i64: 16, 32>}, {transform_indices = @transform_1, window_bounds = array<i64: 2, 16, 16>}, {pipeline_mode = #tpu.pipeline_mode<synchronous>, transform_indices = @transform_2, window_bounds = array<i64: 1, 32>}, {pipeline_mode = #tpu.pipeline_mode<synchronous>, transform_indices = @transform_3, window_bounds = array<i64: 32, 32>}, {pipeline_mode = #tpu.pipeline_mode<synchronous>, transform_indices = @transform_4, window_bounds = array<i64: 1, 32>}, {pipeline_mode = #tpu.pipeline_mode<synchronous>, transform_indices = @transform_5, window_bounds = array<i64: 32, 32>}, {pipeline_mode = #tpu.pipeline_mode<synchronous>, transform_indices = @transform_6, window_bounds = array<i64: 32, 32>}, {pipeline_mode = #tpu.pipeline_mode<synchronous>, transform_indices = @transform_7, window_bounds = array<i64: 1, 32>}, {pipeline_mode = #tpu.pipeline_mode<synchronous>, transform_indices = @transform_8, window_bounds = array<i64: 32, 32>}, {pipeline_mode = #tpu.pipeline_mode<synchronous>, transform_indices = @transform_9, window_bounds = array<i64: 1, 32>}, {transform_indices = @transform_10, window_bounds = array<i64: 2, 1, 16>}]} {
    %c0 = arith.constant 0 : index
    %c0_0 = arith.constant 0 : index
    %0 = vector.load %arg3[%c0, %c0_0] : memref<16x32xf32, #tpu.memory_space<vmem>>, vector<16x32xf32>
    %c0_1 = arith.constant 0 : index
    %c0_2 = arith.constant 0 : index
    %1 = vector.load %arg5[%c0_1, %c0_2] : memref<1x32xf32, #tpu.memory_space<vmem>>, vector<1x32xf32>
    %c0_3 = arith.constant 0 : index
    %c0_4 = arith.constant 0 : index
    %2 = vector.load %arg6[%c0_3, %c0_4] : memref<32x32xf32, #tpu.memory_space<vmem>>, vector<32x32xf32>
    %c0_5 = arith.constant 0 : index
    %c0_6 = arith.constant 0 : index
    %3 = vector.load %arg7[%c0_5, %c0_6] : memref<1x32xf32, #tpu.memory_space<vmem>>, vector<1x32xf32>
    %c0_7 = arith.constant 0 : index
    %c0_8 = arith.constant 0 : index
    %4 = vector.load %arg8[%c0_7, %c0_8] : memref<32x32xf32, #tpu.memory_space<vmem>>, vector<32x32xf32>
    %c0_9 = arith.constant 0 : index
    %c0_10 = arith.constant 0 : index
    %5 = vector.load %arg9[%c0_9, %c0_10] : memref<32x32xf32, #tpu.memory_space<vmem>>, vector<32x32xf32>
    %c0_11 = arith.constant 0 : index
    %c0_12 = arith.constant 0 : index
    %6 = vector.load %arg10[%c0_11, %c0_12] : memref<1x32xf32, #tpu.memory_space<vmem>>, vector<1x32xf32>
    %c0_13 = arith.constant 0 : index
    %c0_14 = arith.constant 0 : index
    %7 = vector.load %arg11[%c0_13, %c0_14] : memref<32x32xf32, #tpu.memory_space<vmem>>, vector<32x32xf32>
    %c0_15 = arith.constant 0 : index
    %c0_16 = arith.constant 0 : index
    %8 = vector.load %arg12[%c0_15, %c0_16] : memref<1x32xf32, #tpu.memory_space<vmem>>, vector<1x32xf32>
    %9 = tpu.iota {dimensions = array<i32: 0>} : vector<16x1xi32>
    %c2_i32 = arith.constant 2 : i32
    %10 = arith.muli %arg0, %c2_i32 : i32
    %c0_i32 = arith.constant 0 : i32
    %11 = arith.addi %10, %c0_i32 : i32
    %12 = arith.index_cast %11 : i32 to index
    %13 = memref.load %arg1[%12] : memref<2xi32, #tpu.memory_space<smem>>
    %14 = arith.index_cast %11 : i32 to index
    %15 = memref.load %arg2[%14] : memref<2xi32, #tpu.memory_space<smem>>
    %c0_17 = arith.constant 0 : index
    %c0_18 = arith.constant 0 : index
    %c0_19 = arith.constant 0 : index
    %16 = vector.load %arg4[%c0_17, %c0_18, %c0_19] : memref<2x16x16xf32, #tpu.memory_space<vmem>>, vector<1x16x16xf32>
    %17 = vector.shape_cast %16 : vector<1x16x16xf32> to vector<16x16xf32>
    %18 = vector.broadcast %15 : i32 to vector<16x1xi32>
    %19 = arith.cmpi eq, %9, %18 : vector<16x1xi32>
    %20 = arith.extui %19 : vector<16x1xi1> to vector<16x1xi32>
    %21 = arith.sitofp %20 : vector<16x1xi32> to vector<16x1xf32>
    %22 = vector.broadcast %21 : vector<16x1xf32> to vector<16x32xf32>
    %23 = vector.broadcast %1 : vector<1x32xf32> to vector<16x32xf32>
    %24 = arith.mulf %22, %23 : vector<16x32xf32>
    %25 = arith.addf %0, %24 : vector<16x32xf32>
    %cst = arith.constant 0.000000e+00 : f32
    %26 = vector.broadcast %cst : f32 to vector<16x32xf32>
    %27 = arith.maximumf %25, %26 : vector<16x32xf32>
    %cst_20 = arith.constant dense<0.000000e+00> : vector<16x32xf32>
    %28 = tpu.matmul %17, %27, %cst_20 {dimension_numbers = #tpu.dot_dimension_numbers<[1], [0], [0], [1], [0, 0, 1, 1], [], []>} : vector<16x16xf32>, vector<16x32xf32>, vector<16x32xf32> -> vector<16x32xf32>
    %cst_21 = arith.constant dense<0.000000e+00> : vector<16x32xf32>
    %29 = tpu.matmul %28, %2, %cst_21 {dimension_numbers = #tpu.dot_dimension_numbers<[1], [0], [0], [1], [0, 0, 1, 1], [], []>} : vector<16x32xf32>, vector<32x32xf32>, vector<16x32xf32> -> vector<16x32xf32>
    %30 = vector.broadcast %3 : vector<1x32xf32> to vector<16x32xf32>
    %31 = arith.addf %29, %30 : vector<16x32xf32>
    %32 = arith.addf %31, %25 : vector<16x32xf32>
    %cst_22 = arith.constant 0.000000e+00 : f32
    %33 = vector.broadcast %cst_22 : f32 to vector<16x32xf32>
    %34 = arith.maximumf %32, %33 : vector<16x32xf32>
    %c0_23 = arith.constant 0 : index
    %c0_24 = arith.constant 0 : index
    %35 = vector.load %arg14[%c0_23, %c0_24] : memref<16x32xf32, #tpu.memory_space<vmem>>, vector<16x32xf32>
    tpu.vector_store %arg14[%c0_23, %c0_24], %34 {strides = array<i32>} : memref<16x32xf32, #tpu.memory_space<vmem>>, vector<16x32xf32>,
    %36 = arith.index_cast %13 : i32 to index
    %c0_25 = arith.constant 0 : index
    %37 = vector.load %arg14[%36, %c0_25] : memref<16x32xf32, #tpu.memory_space<vmem>>, vector<1x32xf32>
    %cst_26 = arith.constant dense<0.000000e+00> : vector<32xf32>
    %38 = vector.multi_reduction <add>, %34, %cst_26 [0] : vector<16x32xf32> to vector<32xf32>
    %39 = vector.shape_cast %38 : vector<32xf32> to vector<1x32xf32>
    %cst_27 = arith.constant 1.600000e+01 : f32
    %40 = vector.broadcast %cst_27 : f32 to vector<1x32xf32>
    %41 = arith.divf %39, %40 : vector<1x32xf32>
    %cst_28 = arith.constant dense<0.000000e+00> : vector<16x32xf32>
    %42 = tpu.matmul %34, %4, %cst_28 {dimension_numbers = #tpu.dot_dimension_numbers<[1], [0], [0], [1], [0, 0, 1, 1], [], []>} : vector<16x32xf32>, vector<32x32xf32>, vector<16x32xf32> -> vector<16x32xf32>
    %cst_29 = arith.constant dense<0.000000e+00> : vector<1x32xf32>
    %43 = tpu.matmul %41, %5, %cst_29 {dimension_numbers = #tpu.dot_dimension_numbers<[1], [0], [0], [1], [0, 0, 1, 1], [], []>} : vector<1x32xf32>, vector<32x32xf32>, vector<1x32xf32> -> vector<1x32xf32>
    %44 = vector.broadcast %43 : vector<1x32xf32> to vector<16x32xf32>
    %45 = arith.addf %42, %44 : vector<16x32xf32>
    %46 = vector.broadcast %6 : vector<1x32xf32> to vector<16x32xf32>
    %47 = arith.addf %45, %46 : vector<16x32xf32>
    %cst_30 = arith.constant 0.000000e+00 : f32
    %48 = vector.broadcast %cst_30 : f32 to vector<16x32xf32>
    %49 = arith.maximumf %47, %48 : vector<16x32xf32>
    %cst_31 = arith.constant dense<0.000000e+00> : vector<16x32xf32>
    %50 = tpu.matmul %49, %7, %cst_31 {dimension_numbers = #tpu.dot_dimension_numbers<[1], [0], [0], [1], [0, 0, 1, 1], [], []>} : vector<16x32xf32>, vector<32x32xf32>, vector<16x32xf32> -> vector<16x32xf32>
    %51 = vector.broadcast %8 : vector<1x32xf32> to vector<16x32xf32>
    %52 = arith.addf %50, %51 : vector<16x32xf32>
    %cst_32 = arith.constant dense<0.000000e+00> : vector<1x16xf32>
    %53 = tpu.matmul %37, %52, %cst_32 {dimension_numbers = #tpu.dot_dimension_numbers<[1], [1], [0], [0], [0, 0, 1, 0], [], []>} : vector<1x32xf32>, vector<16x32xf32>, vector<1x16xf32> -> vector<1x16xf32>
    %c0_33 = arith.constant 0 : index
    %c0_34 = arith.constant 0 : index
    %c0_35 = arith.constant 0 : index
    %54 = vector.load %arg13[%c0_33, %c0_34, %c0_35] : memref<2x1x16xf32, #tpu.memory_space<vmem>>, vector<1x1x16xf32>
    %55 = vector.shape_cast %54 : vector<1x1x16xf32> to vector<1x16xf32>
    %56 = vector.shape_cast %53 : vector<1x16xf32> to vector<1x1x16xf32>
    tpu.vector_store %arg13[%c0_33, %c0_34, %c0_35], %56 {strides = array<i32>} : memref<2x1x16xf32, #tpu.memory_space<vmem>>, vector<1x1x16xf32>,
    %c2_i32_36 = arith.constant 2 : i32
    %57 = arith.muli %arg0, %c2_i32_36 : i32
    %c1_i32 = arith.constant 1 : i32
    %58 = arith.addi %57, %c1_i32 : i32
    %59 = arith.index_cast %58 : i32 to index
    %60 = memref.load %arg1[%59] : memref<2xi32, #tpu.memory_space<smem>>
    %61 = arith.index_cast %58 : i32 to index
    %62 = memref.load %arg2[%61] : memref<2xi32, #tpu.memory_space<smem>>
    %c1 = arith.constant 1 : index
    %c0_37 = arith.constant 0 : index
    %c0_38 = arith.constant 0 : index
    %63 = vector.load %arg4[%c1, %c0_37, %c0_38] : memref<2x16x16xf32, #tpu.memory_space<vmem>>, vector<1x16x16xf32>
    %64 = vector.shape_cast %63 : vector<1x16x16xf32> to vector<16x16xf32>
    %65 = vector.broadcast %62 : i32 to vector<16x1xi32>
    %66 = arith.cmpi eq, %9, %65 : vector<16x1xi32>
    %67 = arith.extui %66 : vector<16x1xi1> to vector<16x1xi32>
    %68 = arith.sitofp %67 : vector<16x1xi32> to vector<16x1xf32>
    %69 = vector.broadcast %68 : vector<16x1xf32> to vector<16x32xf32>
    %70 = vector.broadcast %1 : vector<1x32xf32> to vector<16x32xf32>
    %71 = arith.mulf %69, %70 : vector<16x32xf32>
    %72 = arith.addf %0, %71 : vector<16x32xf32>
    %cst_39 = arith.constant 0.000000e+00 : f32
    %73 = vector.broadcast %cst_39 : f32 to vector<16x32xf32>
    %74 = arith.maximumf %72, %73 : vector<16x32xf32>
    %cst_40 = arith.constant dense<0.000000e+00> : vector<16x32xf32>
    %75 = tpu.matmul %64, %74, %cst_40 {dimension_numbers = #tpu.dot_dimension_numbers<[1], [0], [0], [1], [0, 0, 1, 1], [], []>} : vector<16x16xf32>, vector<16x32xf32>, vector<16x32xf32> -> vector<16x32xf32>
    %cst_41 = arith.constant dense<0.000000e+00> : vector<16x32xf32>
    %76 = tpu.matmul %75, %2, %cst_41 {dimension_numbers = #tpu.dot_dimension_numbers<[1], [0], [0], [1], [0, 0, 1, 1], [], []>} : vector<16x32xf32>, vector<32x32xf32>, vector<16x32xf32> -> vector<16x32xf32>
    %77 = vector.broadcast %3 : vector<1x32xf32> to vector<16x32xf32>
    %78 = arith.addf %76, %77 : vector<16x32xf32>
    %79 = arith.addf %78, %72 : vector<16x32xf32>
    %cst_42 = arith.constant 0.000000e+00 : f32
    %80 = vector.broadcast %cst_42 : f32 to vector<16x32xf32>
    %81 = arith.maximumf %79, %80 : vector<16x32xf32>
    %c0_43 = arith.constant 0 : index
    %c0_44 = arith.constant 0 : index
    %82 = vector.load %arg14[%c0_43, %c0_44] : memref<16x32xf32, #tpu.memory_space<vmem>>, vector<16x32xf32>
    tpu.vector_store %arg14[%c0_43, %c0_44], %81 {strides = array<i32>} : memref<16x32xf32, #tpu.memory_space<vmem>>, vector<16x32xf32>,
    %83 = arith.index_cast %60 : i32 to index
    %c0_45 = arith.constant 0 : index
    %84 = vector.load %arg14[%83, %c0_45] : memref<16x32xf32, #tpu.memory_space<vmem>>, vector<1x32xf32>
    %cst_46 = arith.constant dense<0.000000e+00> : vector<32xf32>
    %85 = vector.multi_reduction <add>, %81, %cst_46 [0] : vector<16x32xf32> to vector<32xf32>
    %86 = vector.shape_cast %85 : vector<32xf32> to vector<1x32xf32>
    %cst_47 = arith.constant 1.600000e+01 : f32
    %87 = vector.broadcast %cst_47 : f32 to vector<1x32xf32>
    %88 = arith.divf %86, %87 : vector<1x32xf32>
    %cst_48 = arith.constant dense<0.000000e+00> : vector<16x32xf32>
    %89 = tpu.matmul %81, %4, %cst_48 {dimension_numbers = #tpu.dot_dimension_numbers<[1], [0], [0], [1], [0, 0, 1, 1], [], []>} : vector<16x32xf32>, vector<32x32xf32>, vector<16x32xf32> -> vector<16x32xf32>
    %cst_49 = arith.constant dense<0.000000e+00> : vector<1x32xf32>
    %90 = tpu.matmul %88, %5, %cst_49 {dimension_numbers = #tpu.dot_dimension_numbers<[1], [0], [0], [1], [0, 0, 1, 1], [], []>} : vector<1x32xf32>, vector<32x32xf32>, vector<1x32xf32> -> vector<1x32xf32>
    %91 = vector.broadcast %90 : vector<1x32xf32> to vector<16x32xf32>
    %92 = arith.addf %89, %91 : vector<16x32xf32>
    %93 = vector.broadcast %6 : vector<1x32xf32> to vector<16x32xf32>
    %94 = arith.addf %92, %93 : vector<16x32xf32>
    %cst_50 = arith.constant 0.000000e+00 : f32
    %95 = vector.broadcast %cst_50 : f32 to vector<16x32xf32>
    %96 = arith.maximumf %94, %95 : vector<16x32xf32>
    %cst_51 = arith.constant dense<0.000000e+00> : vector<16x32xf32>
    %97 = tpu.matmul %96, %7, %cst_51 {dimension_numbers = #tpu.dot_dimension_numbers<[1], [0], [0], [1], [0, 0, 1, 1], [], []>} : vector<16x32xf32>, vector<32x32xf32>, vector<16x32xf32> -> vector<16x32xf32>
    %98 = vector.broadcast %8 : vector<1x32xf32> to vector<16x32xf32>
    %99 = arith.addf %97, %98 : vector<16x32xf32>
    %cst_52 = arith.constant dense<0.000000e+00> : vector<1x16xf32>
    %100 = tpu.matmul %84, %99, %cst_52 {dimension_numbers = #tpu.dot_dimension_numbers<[1], [1], [0], [0], [0, 0, 1, 0], [], []>} : vector<1x32xf32>, vector<16x32xf32>, vector<1x16xf32> -> vector<1x16xf32>
    %c1_53 = arith.constant 1 : index
    %c0_54 = arith.constant 0 : index
    %c0_55 = arith.constant 0 : index
    %101 = vector.load %arg13[%c1_53, %c0_54, %c0_55] : memref<2x1x16xf32, #tpu.memory_space<vmem>>, vector<1x1x16xf32>
    %102 = vector.shape_cast %101 : vector<1x1x16xf32> to vector<1x16xf32>
    %103 = vector.shape_cast %100 : vector<1x16xf32> to vector<1x1x16xf32>
    tpu.vector_store %arg13[%c1_53, %c0_54, %c0_55], %103 {strides = array<i32>} : memref<2x1x16xf32, #tpu.memory_space<vmem>>, vector<1x1x16xf32>,
    return
  }
  func.func @transform_0(%arg0: i32, %arg1: memref<2xi32, #tpu.memory_space<smem>>, %arg2: memref<2xi32, #tpu.memory_space<smem>>) -> (i32, i32) {
    %c0_i32 = arith.constant 0 : i32
    %c0_i32_0 = arith.constant 0 : i32
    %c0_i32_1 = arith.constant 0 : i32
    return %c0_i32, %c0_i32_0 : i32, i32
  }
  func.func @transform_1(%arg0: i32, %arg1: memref<2xi32, #tpu.memory_space<smem>>, %arg2: memref<2xi32, #tpu.memory_space<smem>>) -> (i32, i32, i32) {
    %c0_i32 = arith.constant 0 : i32
    %c0_i32_0 = arith.constant 0 : i32
    %c0_i32_1 = arith.constant 0 : i32
    return %arg0, %c0_i32, %c0_i32_0 : i32, i32, i32
  }
  func.func @transform_2(%arg0: i32, %arg1: memref<2xi32, #tpu.memory_space<smem>>, %arg2: memref<2xi32, #tpu.memory_space<smem>>) -> (i32, i32) {
    %c0_i32 = arith.constant 0 : i32
    %c0_i32_0 = arith.constant 0 : i32
    %c0_i32_1 = arith.constant 0 : i32
    return %c0_i32, %c0_i32_0 : i32, i32
  }
  func.func @transform_3(%arg0: i32, %arg1: memref<2xi32, #tpu.memory_space<smem>>, %arg2: memref<2xi32, #tpu.memory_space<smem>>) -> (i32, i32) {
    %c0_i32 = arith.constant 0 : i32
    %c0_i32_0 = arith.constant 0 : i32
    %c0_i32_1 = arith.constant 0 : i32
    return %c0_i32, %c0_i32_0 : i32, i32
  }
  func.func @transform_4(%arg0: i32, %arg1: memref<2xi32, #tpu.memory_space<smem>>, %arg2: memref<2xi32, #tpu.memory_space<smem>>) -> (i32, i32) {
    %c0_i32 = arith.constant 0 : i32
    %c0_i32_0 = arith.constant 0 : i32
    %c0_i32_1 = arith.constant 0 : i32
    return %c0_i32, %c0_i32_0 : i32, i32
  }
  func.func @transform_5(%arg0: i32, %arg1: memref<2xi32, #tpu.memory_space<smem>>, %arg2: memref<2xi32, #tpu.memory_space<smem>>) -> (i32, i32) {
    %c0_i32 = arith.constant 0 : i32
    %c0_i32_0 = arith.constant 0 : i32
    %c0_i32_1 = arith.constant 0 : i32
    return %c0_i32, %c0_i32_0 : i32, i32
  }
  func.func @transform_6(%arg0: i32, %arg1: memref<2xi32, #tpu.memory_space<smem>>, %arg2: memref<2xi32, #tpu.memory_space<smem>>) -> (i32, i32) {
    %c0_i32 = arith.constant 0 : i32
    %c0_i32_0 = arith.constant 0 : i32
    %c0_i32_1 = arith.constant 0 : i32
    return %c0_i32, %c0_i32_0 : i32, i32
  }
  func.func @transform_7(%arg0: i32, %arg1: memref<2xi32, #tpu.memory_space<smem>>, %arg2: memref<2xi32, #tpu.memory_space<smem>>) -> (i32, i32) {
    %c0_i32 = arith.constant 0 : i32
    %c0_i32_0 = arith.constant 0 : i32
    %c0_i32_1 = arith.constant 0 : i32
    return %c0_i32, %c0_i32_0 : i32, i32
  }
  func.func @transform_8(%arg0: i32, %arg1: memref<2xi32, #tpu.memory_space<smem>>, %arg2: memref<2xi32, #tpu.memory_space<smem>>) -> (i32, i32) {
    %c0_i32 = arith.constant 0 : i32
    %c0_i32_0 = arith.constant 0 : i32
    %c0_i32_1 = arith.constant 0 : i32
    return %c0_i32, %c0_i32_0 : i32, i32
  }
  func.func @transform_9(%arg0: i32, %arg1: memref<2xi32, #tpu.memory_space<smem>>, %arg2: memref<2xi32, #tpu.memory_space<smem>>) -> (i32, i32) {
    %c0_i32 = arith.constant 0 : i32
    %c0_i32_0 = arith.constant 0 : i32
    %c0_i32_1 = arith.constant 0 : i32
    return %c0_i32, %c0_i32_0 : i32, i32
  }
  func.func @transform_10(%arg0: i32, %arg1: memref<2xi32, #tpu.memory_space<smem>>, %arg2: memref<2xi32, #tpu.memory_space<smem>>) -> (i32, i32, i32) {
    %c0_i32 = arith.constant 0 : i32
    %c0_i32_0 = arith.constant 0 : i32
    %c0_i32_1 = arith.constant 0 : i32
    return %arg0, %c0_i32, %c0_i32_0 : i32, i32, i32
  }
}

</mosaic_0001>

<llo_original>
// kernel: tpu_custom_call.1
$region0: #{tpu_custom_call.1}
  #allocation0 [shape = 'u32[]', space=smem, size = 0x4, offset = 0x4, fixed_abs, tag = 'smem constant byte address 0x4 - core index']
  #allocation1 [shape = 'u32[144,128]{1,0:T(1,128)}', space=vmem, size = 0x12000, scoped, tag = 'internal scratch']
  #allocation2 [shape = 'f32[16,32]{1,0:T(8,128)}', space=vmem, size = 0x2000, scoped, tag = 'scratch operand']
  #allocation3 [shape = 's32[1]{0}', space=sflag, size = 0x4, scoped, tag = 'scoped memory for tpu_custom_call.1']
  #allocation4 [shape = 'u8[512]{0}', space=smem, size = 0x200, scoped, tag = 'prefetched SMEM operand 0']
  #allocation5 [shape = 'u8[512]{0}', space=smem, size = 0x200, scoped, tag = 'prefetched SMEM operand 1']
  %s0 = inlined_call_operand.hbm [shape: s32[2], index: 0, kind: input, shape index: {}]
  %s1 = inlined_call_operand.vmem [shape: s32[2], index: 1, kind: input, shape index: {}]
  %s2 = inlined_call_operand.hbm [shape: f32[16,32], index: 2, kind: input, shape index: {}]
  %s3 = inlined_call_operand.hbm [shape: f32[2,16,16], index: 3, kind: input, shape index: {}]
  %s4 = inlined_call_operand.vmem [shape: f32[1,32], index: 4, kind: input, shape index: {}]
  %s5 = inlined_call_operand.hbm [shape: f32[32,32], index: 5, kind: input, shape index: {}]
  %s6 = inlined_call_operand.vmem [shape: f32[1,32], index: 6, kind: input, shape index: {}]
  %s7 = inlined_call_operand.hbm [shape: f32[32,32], index: 7, kind: input, shape index: {}]
  %s8 = inlined_call_operand.hbm [shape: f32[32,32], index: 8, kind: input, shape index: {}]
  %s9 = inlined_call_operand.vmem [shape: f32[1,32], index: 9, kind: input, shape index: {}]
  %s10 = inlined_call_operand.vmem [shape: f32[32,32], index: 10, kind: input, shape index: {}]
  %s11 = inlined_call_operand.vmem [shape: f32[1,32], index: 11, kind: input, shape index: {}]
  %s12 = inlined_call_operand.hbm [shape: f32[2,1,16], index: 12, kind: output, shape index: {}]
  %s13 = sld [smem:[#allocation0]]
  $region70: #{tpu_custom_call.1} parent=0
    _
  %s15 = ssub.s32 1, %s13
  %s16 = scalar_select 0, %s15, %s13
  %18 = dma.hbm_to_smem %s0, 16, [#allocation4], [#allocation3]
  %s19 = sshll.u32 %s1, 4
  %s20 = int_to_ptr.vmem [resolvable:$true] %s19
  %22 = dma.vmem_to_smem %s20, 16, [#allocation5], [#allocation3]
  %23 = dma.done [#allocation3], 32
  %24 = sfence
  $region1: #{tpu_custom_call.1} parent=0
    #allocation6 [shape = 'u8[8192]{0}', space=vmem, size = 0x2000, scoped, tag = 'input window, operand 2, single buffered']
    #allocation7 [shape = 's32[1]{0}', space=sflag, size = 0x4, scoped, tag = 'scoped memory for tpu_custom_call.1']
    #allocation8 [shape = 's32[1]{0}', space=sflag, size = 0x4, scoped, tag = 'scoped memory for tpu_custom_call.1']
    #allocation9 [shape = 'u8[16384]{0}', space=vmem, size = 0x4000, scoped, tag = 'input window, operand 3, single buffered']
    #allocation10 [shape = 's32[1]{0}', space=sflag, size = 0x4, scoped, tag = 'scoped memory for tpu_custom_call.1']
    #allocation11 [shape = 'u8[16384]{0}', space=vmem, size = 0x4000, scoped, tag = 'input window, operand 5, single buffered']
    #allocation12 [shape = 'u8[16384]{0}', space=vmem, size = 0x4000, scoped, tag = 'input window, operand 7, single buffered']
    #allocation13 [shape = 's32[1]{0}', space=sflag, size = 0x4, scoped, tag = 'scoped memory for tpu_custom_call.1']
    #allocation14 [shape = 'u8[16384]{0}', space=vmem, size = 0x4000, scoped, tag = 'input window, operand 8, single buffered']
    #allocation15 [shape = 'u8[1024]{0}', space=vmem, size = 0x400, scoped, tag = 'output window, operand 0, single buffered']
    %25 = vsyncpa [#allocation7], 0
    %26 = vsyncpa [#allocation10], 0
    %27 = vsyncpa [#allocation13], 0
    %28 = vsyncpa [#allocation8], 0
    // Predicated region
    $region2: #{tpu_custom_call.1} parent=1 // pred_check
      _
    $region3: #{tpu_custom_call.1} parent=1 // pred_check_branch
      %30 = sbr.rel (0) target = $region5
    $region4: #{tpu_custom_call.1} parent=1 // pred_region
      %s32 = ssub.s32 256, 256
      %33 = vsyncadd [#allocation7], %s32
      %s34 = sshll.u32 [#allocation6], 4
      %s35 = int_to_ptr.vmem [resolvable:$true] %s34
      %40 = dma.hbm_to_vmem [thread:$0]  %s2, 256, %s35, [#allocation7], 128, 128, 8
    $region5: #{tpu_custom_call.1} parent=1 // pred_fallthru
      _
    // Predicated region
    $region6: #{tpu_custom_call.1} parent=1 // pred_check
      _
    $region7: #{tpu_custom_call.1} parent=1 // pred_check_branch
      %42 = sbr.rel (0) target = $region9
    $region8: #{tpu_custom_call.1} parent=1 // pred_region
      %s44 = ssub.s32 512, 512
      %45 = vsyncadd [#allocation10], %s44
      %s46 = sshll.u32 [#allocation9], 4
      %s47 = int_to_ptr.vmem [resolvable:$true] %s46
      %52 = dma.hbm_to_vmem [thread:$0]  %s3, 512, %s47, [#allocation10], 128, 128, 8
    $region9: #{tpu_custom_call.1} parent=1 // pred_fallthru
      _
    // Predicated region
    $region10: #{tpu_custom_call.1} parent=1 // pred_check
      _
    $region11: #{tpu_custom_call.1} parent=1 // pred_check_branch
      %54 = sbr.rel (0) target = $region13
    $region12: #{tpu_custom_call.1} parent=1 // pred_region
      _
    $region13: #{tpu_custom_call.1} parent=1 // pred_fallthru
      _
    // Predicated region
    $region14: #{tpu_custom_call.1} parent=1 // pred_check
      _
    $region15: #{tpu_custom_call.1} parent=1 // pred_check_branch
      %56 = sbr.rel (0) target = $region17
    $region16: #{tpu_custom_call.1} parent=1 // pred_region
      %s58 = ssub.s32 512, 512
      %59 = vsyncadd [#allocation10], %s58
      %s60 = sshll.u32 [#allocation11], 4
      %s61 = int_to_ptr.vmem [resolvable:$true] %s60
      %66 = dma.hbm_to_vmem [thread:$0]  %s5, 512, %s61, [#allocation10], 128, 128, 8
    $region17: #{tpu_custom_call.1} parent=1 // pred_fallthru
      _
    // Predicated region
    $region18: #{tpu_custom_call.1} parent=1 // pred_check
      _
    $region19: #{tpu_custom_call.1} parent=1 // pred_check_branch
      %68 = sbr.rel (0) target = $region21
    $region20: #{tpu_custom_call.1} parent=1 // pred_region
      _
    $region21: #{tpu_custom_call.1} parent=1 // pred_fallthru
      _
    // Predicated region
    $region22: #{tpu_custom_call.1} parent=1 // pred_check
      _
    $region23: #{tpu_custom_call.1} parent=1 // pred_check_branch
      %70 = sbr.rel (0) target = $region25
    $region24: #{tpu_custom_call.1} parent=1 // pred_region
      %s72 = ssub.s32 512, 512
      %73 = vsyncadd [#allocation13], %s72
      %s74 = sshll.u32 [#allocation12], 4
      %s75 = int_to_ptr.vmem [resolvable:$true] %s74
      %80 = dma.hbm_to_vmem [thread:$0]  %s7, 512, %s75, [#allocation13], 128, 128, 8
    $region25: #{tpu_custom_call.1} parent=1 // pred_fallthru
      _
    // Predicated region
    $region26: #{tpu_custom_call.1} parent=1 // pred_check
      _
    $region27: #{tpu_custom_call.1} parent=1 // pred_check_branch
      %82 = sbr.rel (0) target = $region29
    $region28: #{tpu_custom_call.1} parent=1 // pred_region
      %s84 = ssub.s32 512, 512
      %85 = vsyncadd [#allocation13], %s84
      %s86 = sshll.u32 [#allocation14], 4
      %s87 = int_to_ptr.vmem [resolvable:$true] %s86
      %92 = dma.hbm_to_vmem [thread:$0]  %s8, 512, %s87, [#allocation13], 128, 128, 8
    $region29: #{tpu_custom_call.1} parent=1 // pred_fallthru
      _
    // Predicated region
    $region30: #{tpu_custom_call.1} parent=1 // pred_check
      _
    $region31: #{tpu_custom_call.1} parent=1 // pred_check_branch
      %94 = sbr.rel (0) target = $region33
    $region32: #{tpu_custom_call.1} parent=1 // pred_region
      _
    $region33: #{tpu_custom_call.1} parent=1 // pred_fallthru
      _
    // Predicated region
    $region34: #{tpu_custom_call.1} parent=1 // pred_check
      _
    $region35: #{tpu_custom_call.1} parent=1 // pred_check_branch
      %96 = sbr.rel (0) target = $region37
    $region36: #{tpu_custom_call.1} parent=1 // pred_region
      _
    $region37: #{tpu_custom_call.1} parent=1 // pred_fallthru
      _
    // Predicated region
    $region38: #{tpu_custom_call.1} parent=1 // pred_check
      _
    $region39: #{tpu_custom_call.1} parent=1 // pred_check_branch
      %98 = sbr.rel (0) target = $region41
    $region40: #{tpu_custom_call.1} parent=1 // pred_region
      _
    $region41: #{tpu_custom_call.1} parent=1 // pred_fallthru
      _
    // Predicated region
    $region42: #{tpu_custom_call.1} parent=1 // pred_check
      _
    $region43: #{tpu_custom_call.1} parent=1 // pred_check_branch
      %100 = sbr.rel (0) target = $region45
    $region44: #{tpu_custom_call.1} parent=1 // pred_region
      %101 = dma.done [#allocation7], 256
    $region45: #{tpu_custom_call.1} parent=1 // pred_fallthru
      _
    // Predicated region
    $region46: #{tpu_custom_call.1} parent=1 // pred_check
      _
    $region47: #{tpu_custom_call.1} parent=1 // pred_check_branch
      %103 = sbr.rel (0) target = $region49
    $region48: #{tpu_custom_call.1} parent=1 // pred_region
      %104 = dma.done [#allocation10], 512
    $region49: #{tpu_custom_call.1} parent=1 // pred_fallthru
      _
    // Predicated region
    $region50: #{tpu_custom_call.1} parent=1 // pred_check
      _
    $region51: #{tpu_custom_call.1} parent=1 // pred_check_branch
      %106 = sbr.rel (0) target = $region53
    $region52: #{tpu_custom_call.1} parent=1 // pred_region
      %107 = dma.done [#allocation10], 512
    $region53: #{tpu_custom_call.1} parent=1 // pred_fallthru
      _
    // Predicated region
    $region54: #{tpu_custom_call.1} parent=1 // pred_check
      _
    $region55: #{tpu_custom_call.1} parent=1 // pred_check_branch
      %109 = sbr.rel (0) target = $region57
    $region56: #{tpu_custom_call.1} parent=1 // pred_region
      %110 = dma.done [#allocation13], 512
    $region57: #{tpu_custom_call.1} parent=1 // pred_fallthru
      _
    // Predicated region
    $region58: #{tpu_custom_call.1} parent=1 // pred_check
      _
    $region59: #{tpu_custom_call.1} parent=1 // pred_check_branch
      %112 = sbr.rel (0) target = $region61
    $region60: #{tpu_custom_call.1} parent=1 // pred_region
      %113 = dma.done [#allocation13], 512
    $region61: #{tpu_custom_call.1} parent=1 // pred_fallthru
      _
    %v114 = vld [vmem:[#allocation6] sm:$0xff]
    %v115 = vld [vmem:[#allocation6 + $0x8] sm:$0xff]
    %v116 = vld [vmem:[%s4] sm:$0x1]
    %v117 = vld [vmem:[#allocation11] sm:$0xff]
    %v118 = vld [vmem:[#allocation11 + $0x8] sm:$0xff]
    %v119 = vld [vmem:[#allocation11 + $0x10] sm:$0xff]
    %v120 = vld [vmem:[#allocation11 + $0x18] sm:$0xff]
    %v121 = vld [vmem:[%s6] sm:$0x1]
    %v122 = vld [vmem:[#allocation12] sm:$0xff]
    %v123 = vld [vmem:[#allocation12 + $0x8] sm:$0xff]
    %v124 = vld [vmem:[#allocation12 + $0x10] sm:$0xff]
    %v125 = vld [vmem:[#allocation12 + $0x18] sm:$0xff]
    %v126 = vld [vmem:[#allocation14] sm:$0xff]
    %v127 = vld [vmem:[#allocation14 + $0x8] sm:$0xff]
    %v128 = vld [vmem:[#allocation14 + $0x10] sm:$0xff]
    %v129 = vld [vmem:[#allocation14 + $0x18] sm:$0xff]
    %v130 = vld [vmem:[%s9] sm:$0x1]
    %v131 = vld [vmem:[%s10] sm:$0xff]
    %v132 = vld [vmem:[%s10 + $0x8] sm:$0xff]
    %v133 = vld [vmem:[%s10 + $0x10] sm:$0xff]
    %v134 = vld [vmem:[%s10 + $0x18] sm:$0xff]
    %v135 = vld [vmem:[%s11] sm:$0x1]
    %v136 = vlaneseq
    %v137 = vshrl.u32 %v136, 7
    %v138 = vadd.s32 %v137, 8
    %s139 = smul.u32 0, 2
    %s140 = sld [smem:[#allocation4 + %s139]]
    %s141 = sld [smem:[#allocation5 + %s139]]
    %v142 = vld [vmem:[#allocation9] sm:$0xff]
    %v143 = vld [vmem:[#allocation9 + $0x8] sm:$0xff]
    %v144 = vstv %s141
    %vm145 = vcmp.eq.s32.totalorder %v137, %v144
    %vm146 = vcmp.eq.s32.totalorder %v138, %v144
    %v147 = vsel %vm145, 1, 0
    %v148 = vsel %vm146, 1, 0
    %v149 = vcvt.s32.f32 %v147
    %v150 = vcvt.s32.f32 %v148
    %v152 = vlaneseq
    %v153 = vshrl.u32 %v152, 7
    %v154 = vsub.s32 0, %v153
    %v155 = vrot.slane %v116, %v154
    %v157 = vmul.f32 %v149, %v155
    %v158 = vmul.f32 %v150, %v155
    %v159 = vadd.f32 %v114, %v157
    %v160 = vadd.f32 %v115, %v158
    %v161 = vmax.f32 %v159, 0.0
    %v162 = vmax.f32 %v160, 0.0
    %vm163 = vcmask 130048
    %v165 = vsel %vm163, %v142, 0
    %v168 = vsel %vm163, %v143, 0
    %170 = vmatprep.subr.mxu0 0.0
    %171 = vmatpush1.msra.mxu0 %v161
    %172 = vmatprep.subr.mxu0 0.0
    %173 = vmatpush1.msra.mxu0 %v162
    %174 = vmatprep.subr.mxu0 0.0
    %175 = vmatpush1.msra.mxu0 0.0
    %176 = vmatprep.subr.mxu0 0.0
    %177 = vmatpush1.msra.mxu0 0.0
    %178 = vmatprep.subr.mxu0 0.0
    %179 = vmatpush1.msra.mxu0 0.0
    %180 = vmatprep.subr.mxu0 0.0
    %181 = vmatpush1.msra.mxu0 0.0
    %182 = vmatprep.subr.mxu0 0.0
    %183 = vmatpush1.msra.mxu0 0.0
    %184 = vmatprep.subr.mxu0 0.0
    %185 = vmatpush1.msra.mxu0 0.0
    %186 = vmatprep.subr.mxu0 0.0
    %187 = vmatpush1.msra.mxu0 0.0
    %188 = vmatprep.subr.mxu0 0.0
    %189 = vmatpush1.msra.mxu0 0.0
    %190 = vmatprep.subr.mxu0 0.0
    %191 = vmatpush1.msra.mxu0 0.0
    %192 = vmatprep.subr.mxu0 0.0
    %193 = vmatpush1.msra.mxu0 0.0
    %194 = vmatprep.subr.mxu0 0.0
    %195 = vmatpush1.msra.mxu0 0.0
    %196 = vmatprep.subr.mxu0 0.0
    %197 = vmatpush1.msra.mxu0 0.0
    %198 = vmatprep.subr.mxu0 0.0
    %199 = vmatpush1.msra.mxu0 0.0
    %200 = vmatprep.subr.mxu0 0.0
    %201 = vmatpush1.msra.mxu0 0.0
    %202 = vmatprep.subr.mxu0 0.0
    %203 = vmatpush1.msra.mxu0 0.0
    %204 = vmatprep.subr.mxu0 0.0
    %205 = vmatpush1.msra.mxu0 0.0
    %206 = vmatprep.subr.mxu0 0.0
    %207 = vmatpush1.msra.mxu0 0.0
    %208 = vmatprep.subr.mxu0 0.0
    %209 = vmatpush1.msra.mxu0 0.0
    %210 = vmatprep.subr.mxu0 0.0
    %211 = vmatpush1.msra.mxu0 0.0
    %212 = vmatprep.subr.mxu0 0.0
    %213 = vmatpush1.msra.mxu0 0.0
    %214 = vmatprep.subr.mxu0 0.0
    %215 = vmatpush1.msra.mxu0 0.0
    %216 = vmatprep.subr.mxu0 0.0
    %217 = vmatpush1.msra.mxu0 0.0
    %218 = vmatprep.subr.mxu0 0.0
    %219 = vmatpush1.msra.mxu0 0.0
    %220 = vmatprep.subr.mxu0 0.0
    %221 = vmatpush1.msra.mxu0 0.0
    %222 = vmatprep.subr.mxu0 0.0
    %223 = vmatpush1.msra.mxu0 0.0
    %224 = vmatprep.subr.mxu0 0.0
    %225 = vmatpush1.msra.mxu0 0.0
    %226 = vmatprep.subr.mxu0 0.0
    %227 = vmatpush1.msra.mxu0 0.0
    %228 = vmatprep.subr.mxu0 0.0
    %229 = vmatpush1.msra.mxu0 0.0
    %230 = vmatprep.subr.mxu0 0.0
    %231 = vmatpush1.msra.mxu0 0.0
    %232 = vmatprep.subr.mxu0 0.0
    %233 = vmatpush1.msra.mxu0 0.0
    %234 = vmatprep.mubr.f32.mxu0 0.0
    %235 = vmatmul.mubr.f32.gmra.mrb[0].mxu0 %v165
    %v236 = vpop.f32.mrb[0].mxu0
    %v237 = vadd.f32 0.0, %v236
    %v238 = vpop.f32.mrb[0].mxu0
    %239 = vmatprep.mubr.f32.mxu0 0.0
    %240 = vmatmul.mubr.f32.gmra.mrb[0].mxu0 %v168
    %v241 = vpop.f32.mrb[0].mxu0
    %v242 = vadd.f32 0.0, %v241
    %v243 = vpop.f32.mrb[0].mxu0
    %244 = vdwg.mxu0
    %v246 = vlaneseq
    %v247 = vshrl.u32 %v246, 7
    %v248 = vsub.s32 0, %v247
    %v249 = vrot.slane %v121, %v248
    %vm251 = vcmask 261120
    %v253 = vsel %vm251, %v237, 0
    %v256 = vsel %vm251, %v242, 0
    %258 = vmatprep.subr.mxu0 0.0
    %259 = vmatpush1.msra.mxu0 %v117
    %260 = vmatprep.subr.mxu0 0.0
    %261 = vmatpush1.msra.mxu0 %v118
    %262 = vmatprep.subr.mxu0 0.0
    %263 = vmatpush1.msra.mxu0 %v119
    %264 = vmatprep.subr.mxu0 0.0
    %265 = vmatpush1.msra.mxu0 %v120
    %266 = vmatprep.subr.mxu0 0.0
    %267 = vmatpush1.msra.mxu0 0.0
    %268 = vmatprep.subr.mxu0 0.0
    %269 = vmatpush1.msra.mxu0 0.0
    %270 = vmatprep.subr.mxu0 0.0
    %271 = vmatpush1.msra.mxu0 0.0
    %272 = vmatprep.subr.mxu0 0.0
    %273 = vmatpush1.msra.mxu0 0.0
    %274 = vmatprep.subr.mxu0 0.0
    %275 = vmatpush1.msra.mxu0 0.0
    %276 = vmatprep.subr.mxu0 0.0
    %277 = vmatpush1.msra.mxu0 0.0
    %278 = vmatprep.subr.mxu0 0.0
    %279 = vmatpush1.msra.mxu0 0.0
    %280 = vmatprep.subr.mxu0 0.0
    %281 = vmatpush1.msra.mxu0 0.0
    %282 = vmatprep.subr.mxu0 0.0
    %283 = vmatpush1.msra.mxu0 0.0
    %284 = vmatprep.subr.mxu0 0.0
    %285 = vmatpush1.msra.mxu0 0.0
    %286 = vmatprep.subr.mxu0 0.0
    %287 = vmatpush1.msra.mxu0 0.0
    %288 = vmatprep.subr.mxu0 0.0
    %289 = vmatpush1.msra.mxu0 0.0
    %290 = vmatprep.subr.mxu0 0.0
    %291 = vmatpush1.msra.mxu0 0.0
    %292 = vmatprep.subr.mxu0 0.0
    %293 = vmatpush1.msra.mxu0 0.0
    %294 = vmatprep.subr.mxu0 0.0
    %295 = vmatpush1.msra.mxu0 0.0
    %296 = vmatprep.subr.mxu0 0.0
    %297 = vmatpush1.msra.mxu0 0.0
    %298 = vmatprep.subr.mxu0 0.0
    %299 = vmatpush1.msra.mxu0 0.0
    %300 = vmatprep.subr.mxu0 0.0
    %301 = vmatpush1.msra.mxu0 0.0
    %302 = vmatprep.subr.mxu0 0.0
    %303 = vmatpush1.msra.mxu0 0.0
    %304 = vmatprep.subr.mxu0 0.0
    %305 = vmatpush1.msra.mxu0 0.0
    %306 = vmatprep.subr.mxu0 0.0
    %307 = vmatpush1.msra.mxu0 0.0
    %308 = vmatprep.subr.mxu0 0.0
    %309 = vmatpush1.msra.mxu0 0.0
    %310 = vmatprep.subr.mxu0 0.0
    %311 = vmatpush1.msra.mxu0 0.0
    %312 = vmatprep.subr.mxu0 0.0
    %313 = vmatpush1.msra.mxu0 0.0
    %314 = vmatprep.subr.mxu0 0.0
    %315 = vmatpush1.msra.mxu0 0.0
    %316 = vmatprep.subr.mxu0 0.0
    %317 = vmatpush1.msra.mxu0 0.0
    %318 = vmatprep.subr.mxu0 0.0
    %319 = vmatpush1.msra.mxu0 0.0
    %320 = vmatprep.subr.mxu0 0.0
    %321 = vmatpush1.msra.mxu0 0.0
    %322 = vmatprep.mubr.f32.mxu0 0.0
    %323 = vmatmul.mubr.f32.gmra.mrb[0].mxu0 %v253
    %v324 = vpop.f32.mrb[0].mxu0
    %v325 = vadd.f32 %v249, %v324
    %v326 = vpop.f32.mrb[0].mxu0
    %327 = vmatprep.mubr.f32.mxu0 0.0
    %328 = vmatmul.mubr.f32.gmra.mrb[0].mxu0 %v256
    %v329 = vpop.f32.mrb[0].mxu0
    %v330 = vadd.f32 %v249, %v329
    %v331 = vpop.f32.mrb[0].mxu0
    %332 = vdwg.mxu0
    %v333 = vadd.f32 %v325, %v159
    %v334 = vadd.f32 %v330, %v160
    %v335 = vmax.f32 %v333, 0.0
    %v336 = vmax.f32 %v334, 0.0
    %337 = vst.msk [vmem:[#allocation2] sm:$0xff] %vm251, %v335
    %338 = vst.msk [vmem:[#allocation2 + $0x8] sm:$0xff] %vm251, %v336
    %s339 = scalar_lea.vmem [#allocation2], %s140
    %v340 = vld [vmem:[%s339] sm:$0x1]
    %v341 = vsel %vm251, %v335, 0.0
    %v342 = vsel %vm251, %v336, 0.0
    %v343 = vadd.f32 %v341, %v342
    %v344 = vrot.slane %v343, 4
    %v345 = vadd.f32 %v343, %v344
    %v346 = vrot.slane %v345, 2
    %v347 = vadd.f32 %v345, %v346
    %v348 = vrot.slane %v347, 1
    %v349 = vadd.f32 %v347, %v348
    %v350 = vrcp.pop 16.0
    %v351 = vmul.f32 %v349, %v350
    %v353 = vsel %vm251, %v351, 0
    %355 = vmatprep.subr.mxu0 0.0
    %356 = vmatpush1.msra.mxu0 %v126
    %357 = vmatprep.subr.mxu0 0.0
    %358 = vmatpush1.msra.mxu0 %v127
    %359 = vmatprep.subr.mxu0 0.0
    %360 = vmatpush1.msra.mxu0 %v128
    %361 = vmatprep.subr.mxu0 0.0
    %362 = vmatpush1.msra.mxu0 %v129
    %363 = vmatprep.subr.mxu0 0.0
    %364 = vmatpush1.msra.mxu0 0.0
    %365 = vmatprep.subr.mxu0 0.0
    %366 = vmatpush1.msra.mxu0 0.0
    %367 = vmatprep.subr.mxu0 0.0
    %368 = vmatpush1.msra.mxu0 0.0
    %369 = vmatprep.subr.mxu0 0.0
    %370 = vmatpush1.msra.mxu0 0.0
    %371 = vmatprep.subr.mxu0 0.0
    %372 = vmatpush1.msra.mxu0 0.0
    %373 = vmatprep.subr.mxu0 0.0
    %374 = vmatpush1.msra.mxu0 0.0
    %375 = vmatprep.subr.mxu0 0.0
    %376 = vmatpush1.msra.mxu0 0.0
    %377 = vmatprep.subr.mxu0 0.0
    %378 = vmatpush1.msra.mxu0 0.0
    %379 = vmatprep.subr.mxu0 0.0
    %380 = vmatpush1.msra.mxu0 0.0
    %381 = vmatprep.subr.mxu0 0.0
    %382 = vmatpush1.msra.mxu0 0.0
    %383 = vmatprep.subr.mxu0 0.0
    %384 = vmatpush1.msra.mxu0 0.0
    %385 = vmatprep.subr.mxu0 0.0
    %386 = vmatpush1.msra.mxu0 0.0
    %387 = vmatprep.subr.mxu0 0.0
    %388 = vmatpush1.msra.mxu0 0.0
    %389 = vmatprep.subr.mxu0 0.0
    %390 = vmatpush1.msra.mxu0 0.0
    %391 = vmatprep.subr.mxu0 0.0
    %392 = vmatpush1.msra.mxu0 0.0
    %393 = vmatprep.subr.mxu0 0.0
    %394 = vmatpush1.msra.mxu0 0.0
    %395 = vmatprep.subr.mxu0 0.0
    %396 = vmatpush1.msra.mxu0 0.0
    %397 = vmatprep.subr.mxu0 0.0
    %398 = vmatpush1.msra.mxu0 0.0
    %399 = vmatprep.subr.mxu0 0.0
    %400 = vmatpush1.msra.mxu0 0.0
    %401 = vmatprep.subr.mxu0 0.0
    %402 = vmatpush1.msra.mxu0 0.0
    %403 = vmatprep.subr.mxu0 0.0
    %404 = vmatpush1.msra.mxu0 0.0
    %405 = vmatprep.subr.mxu0 0.0
    %406 = vmatpush1.msra.mxu0 0.0
    %407 = vmatprep.subr.mxu0 0.0
    %408 = vmatpush1.msra.mxu0 0.0
    %409 = vmatprep.subr.mxu0 0.0
    %410 = vmatpush1.msra.mxu0 0.0
    %411 = vmatprep.subr.mxu0 0.0
    %412 = vmatpush1.msra.mxu0 0.0
    %413 = vmatprep.subr.mxu0 0.0
    %414 = vmatpush1.msra.mxu0 0.0
    %415 = vmatprep.subr.mxu0 0.0
    %416 = vmatpush1.msra.mxu0 0.0
    %417 = vmatprep.subr.mxu0 0.0
    %418 = vmatpush1.msra.mxu0 0.0
    %419 = vmatprep.mubr.f32.mxu0 0.0
    %420 = vmatmul.mubr.f32.gmra.mrb[0].mxu0 %v353
    %v421 = vpop.f32.mrb[0].mxu0
    %v422 = vadd.f32 0.0, %v421
    %v423 = vpop.f32.mrb[0].mxu0
    %424 = vdwg.mxu0
    %v425 = vlaneseq
    %v426 = vshrl.u32 %v425, 7
    %v427 = vsub.s32 0, %v426
    %v428 = vrot.slane %v422, %v427
    %v430 = vsel %vm251, %v335, 0
    %v433 = vsel %vm251, %v336, 0
    %435 = vmatprep.subr.mxu0 0.0
    %436 = vmatpush1.msra.mxu0 %v122
    %437 = vmatprep.subr.mxu0 0.0
    %438 = vmatpush1.msra.mxu0 %v123
    %439 = vmatprep.subr.mxu0 0.0
    %440 = vmatpush1.msra.mxu0 %v124
    %441 = vmatprep.subr.mxu0 0.0
    %442 = vmatpush1.msra.mxu0 %v125
    %443 = vmatprep.subr.mxu0 0.0
    %444 = vmatpush1.msra.mxu0 0.0
    %445 = vmatprep.subr.mxu0 0.0
    %446 = vmatpush1.msra.mxu0 0.0
    %447 = vmatprep.subr.mxu0 0.0
    %448 = vmatpush1.msra.mxu0 0.0
    %449 = vmatprep.subr.mxu0 0.0
    %450 = vmatpush1.msra.mxu0 0.0
    %451 = vmatprep.subr.mxu0 0.0
    %452 = vmatpush1.msra.mxu0 0.0
    %453 = vmatprep.subr.mxu0 0.0
    %454 = vmatpush1.msra.mxu0 0.0
    %455 = vmatprep.subr.mxu0 0.0
    %456 = vmatpush1.msra.mxu0 0.0
    %457 = vmatprep.subr.mxu0 0.0
    %458 = vmatpush1.msra.mxu0 0.0
    %459 = vmatprep.subr.mxu0 0.0
    %460 = vmatpush1.msra.mxu0 0.0
    %461 = vmatprep.subr.mxu0 0.0
    %462 = vmatpush1.msra.mxu0 0.0
    %463 = vmatprep.subr.mxu0 0.0
    %464 = vmatpush1.msra.mxu0 0.0
    %465 = vmatprep.subr.mxu0 0.0
    %466 = vmatpush1.msra.mxu0 0.0
    %467 = vmatprep.subr.mxu0 0.0
    %468 = vmatpush1.msra.mxu0 0.0
    %469 = vmatprep.subr.mxu0 0.0
    %470 = vmatpush1.msra.mxu0 0.0
    %471 = vmatprep.subr.mxu0 0.0
    %472 = vmatpush1.msra.mxu0 0.0
    %473 = vmatprep.subr.mxu0 0.0
    %474 = vmatpush1.msra.mxu0 0.0
    %475 = vmatprep.subr.mxu0 0.0
    %476 = vmatpush1.msra.mxu0 0.0
    %477 = vmatprep.subr.mxu0 0.0
    %478 = vmatpush1.msra.mxu0 0.0
    %479 = vmatprep.subr.mxu0 0.0
    %480 = vmatpush1.msra.mxu0 0.0
    %481 = vmatprep.subr.mxu0 0.0
    %482 = vmatpush1.msra.mxu0 0.0
    %483 = vmatprep.subr.mxu0 0.0
    %484 = vmatpush1.msra.mxu0 0.0
    %485 = vmatprep.subr.mxu0 0.0
    %486 = vmatpush1.msra.mxu0 0.0
    %487 = vmatprep.subr.mxu0 0.0
    %488 = vmatpush1.msra.mxu0 0.0
    %489 = vmatprep.subr.mxu0 0.0
    %490 = vmatpush1.msra.mxu0 0.0
    %491 = vmatprep.subr.mxu0 0.0
    %492 = vmatpush1.msra.mxu0 0.0
    %493 = vmatprep.subr.mxu0 0.0
    %494 = vmatpush1.msra.mxu0 0.0
    %495 = vmatprep.subr.mxu0 0.0
    %496 = vmatpush1.msra.mxu0 0.0
    %497 = vmatprep.subr.mxu0 0.0
    %498 = vmatpush1.msra.mxu0 0.0
    %499 = vmatprep.mubr.f32.mxu0 0.0
    %500 = vmatmul.mubr.f32.gmra.mrb[0].mxu0 %v430
    %v501 = vpop.f32.mrb[0].mxu0
    %v502 = vadd.f32 %v428, %v501
    %v503 = vpop.f32.mrb[0].mxu0
    %504 = vmatprep.mubr.f32.mxu0 0.0
    %505 = vmatmul.mubr.f32.gmra.mrb[0].mxu0 %v433
    %v506 = vpop.f32.mrb[0].mxu0
    %v507 = vadd.f32 %v428, %v506
    %v508 = vpop.f32.mrb[0].mxu0
    %509 = vdwg.mxu0
    %v511 = vlaneseq
    %v512 = vshrl.u32 %v511, 7
    %v513 = vsub.s32 0, %v512
    %v514 = vrot.slane %v130, %v513
    %v516 = vadd.f32 %v502, %v514
    %v517 = vadd.f32 %v507, %v514
    %v518 = vmax.f32 %v516, 0.0
    %v519 = vmax.f32 %v517, 0.0
    %v521 = vlaneseq
    %v522 = vshrl.u32 %v521, 7
    %v523 = vsub.s32 0, %v522
    %v524 = vrot.slane %v135, %v523
    %v527 = vsel %vm251, %v518, 0
    %v530 = vsel %vm251, %v519, 0
    %532 = vmatprep.subr.mxu0 0.0
    %533 = vmatpush1.msra.mxu0 %v131
    %534 = vmatprep.subr.mxu0 0.0
    %535 = vmatpush1.msra.mxu0 %v132
    %536 = vmatprep.subr.mxu0 0.0
    %537 = vmatpush1.msra.mxu0 %v133
    %538 = vmatprep.subr.mxu0 0.0
    %539 = vmatpush1.msra.mxu0 %v134
    %540 = vmatprep.subr.mxu0 0.0
    %541 = vmatpush1.msra.mxu0 0.0
    %542 = vmatprep.subr.mxu0 0.0
    %543 = vmatpush1.msra.mxu0 0.0
    %544 = vmatprep.subr.mxu0 0.0
    %545 = vmatpush1.msra.mxu0 0.0
    %546 = vmatprep.subr.mxu0 0.0
    %547 = vmatpush1.msra.mxu0 0.0
    %548 = vmatprep.subr.mxu0 0.0
    %549 = vmatpush1.msra.mxu0 0.0
    %550 = vmatprep.subr.mxu0 0.0
    %551 = vmatpush1.msra.mxu0 0.0
    %552 = vmatprep.subr.mxu0 0.0
    %553 = vmatpush1.msra.mxu0 0.0
    %554 = vmatprep.subr.mxu0 0.0
    %555 = vmatpush1.msra.mxu0 0.0
    %556 = vmatprep.subr.mxu0 0.0
    %557 = vmatpush1.msra.mxu0 0.0
    %558 = vmatprep.subr.mxu0 0.0
    %559 = vmatpush1.msra.mxu0 0.0
    %560 = vmatprep.subr.mxu0 0.0
    %561 = vmatpush1.msra.mxu0 0.0
    %562 = vmatprep.subr.mxu0 0.0
    %563 = vmatpush1.msra.mxu0 0.0
    %564 = vmatprep.subr.mxu0 0.0
    %565 = vmatpush1.msra.mxu0 0.0
    %566 = vmatprep.subr.mxu0 0.0
    %567 = vmatpush1.msra.mxu0 0.0
    %568 = vmatprep.subr.mxu0 0.0
    %569 = vmatpush1.msra.mxu0 0.0
    %570 = vmatprep.subr.mxu0 0.0
    %571 = vmatpush1.msra.mxu0 0.0
    %572 = vmatprep.subr.mxu0 0.0
    %573 = vmatpush1.msra.mxu0 0.0
    %574 = vmatprep.subr.mxu0 0.0
    %575 = vmatpush1.msra.mxu0 0.0
    %576 = vmatprep.subr.mxu0 0.0
    %577 = vmatpush1.msra.mxu0 0.0
    %578 = vmatprep.subr.mxu0 0.0
    %579 = vmatpush1.msra.mxu0 0.0
    %580 = vmatprep.subr.mxu0 0.0
    %581 = vmatpush1.msra.mxu0 0.0
    %582 = vmatprep.subr.mxu0 0.0
    %583 = vmatpush1.msra.mxu0 0.0
    %584 = vmatprep.subr.mxu0 0.0
    %585 = vmatpush1.msra.mxu0 0.0
    %586 = vmatprep.subr.mxu0 0.0
    %587 = vmatpush1.msra.mxu0 0.0
    %588 = vmatprep.subr.mxu0 0.0
    %589 = vmatpush1.msra.mxu0 0.0
    %590 = vmatprep.subr.mxu0 0.0
    %591 = vmatpush1.msra.mxu0 0.0
    %592 = vmatprep.subr.mxu0 0.0
    %593 = vmatpush1.msra.mxu0 0.0
    %594 = vmatprep.subr.mxu0 0.0
    %595 = vmatpush1.msra.mxu0 0.0
    %596 = vmatprep.mubr.f32.mxu0 0.0
    %597 = vmatmul.mubr.f32.gmra.mrb[0].mxu0 %v527
    %v598 = vpop.f32.mrb[0].mxu0
    %v599 = vadd.f32 %v524, %v598
    %v600 = vpop.f32.mrb[0].mxu0
    %601 = vmatprep.mubr.f32.mxu0 0.0
    %602 = vmatmul.mubr.f32.gmra.mrb[0].mxu0 %v530
    %v603 = vpop.f32.mrb[0].mxu0
    %v604 = vadd.f32 %v524, %v603
    %v605 = vpop.f32.mrb[0].mxu0
    %606 = vdwg.mxu0
    %v608 = vsel %vm251, %v340, 0
    %v611 = vsel %vm251, %v599, 0
    %v614 = vsel %vm251, %v604, 0
    %616 = vmatprep.subr.mxu0 0.0
    %617 = vmatpush1.xpose.msra.mxu0 %v611
    %618 = vmatprep.subr.mxu0 0.0
    %619 = vmatpush1.xpose.msra.mxu0 %v614
    %620 = vmatprep.subr.mxu0 0.0
    %621 = vmatpush1.xpose.msra.mxu0 0.0
    %622 = vmatprep.subr.mxu0 0.0
    %623 = vmatpush1.xpose.msra.mxu0 0.0
    %624 = vmatprep.subr.mxu0 0.0
    %625 = vmatpush1.xpose.msra.mxu0 0.0
    %626 = vmatprep.subr.mxu0 0.0
    %627 = vmatpush1.xpose.msra.mxu0 0.0
    %628 = vmatprep.subr.mxu0 0.0
    %629 = vmatpush1.xpose.msra.mxu0 0.0
    %630 = vmatprep.subr.mxu0 0.0
    %631 = vmatpush1.xpose.msra.mxu0 0.0
    %632 = vmatprep.subr.mxu0 0.0
    %633 = vmatpush1.xpose.msra.mxu0 0.0
    %634 = vmatprep.subr.mxu0 0.0
    %635 = vmatpush1.xpose.msra.mxu0 0.0
    %636 = vmatprep.subr.mxu0 0.0
    %637 = vmatpush1.xpose.msra.mxu0 0.0
    %638 = vmatprep.subr.mxu0 0.0
    %639 = vmatpush1.xpose.msra.mxu0 0.0
    %640 = vmatprep.subr.mxu0 0.0
    %641 = vmatpush1.xpose.msra.mxu0 0.0
    %642 = vmatprep.subr.mxu0 0.0
    %643 = vmatpush1.xpose.msra.mxu0 0.0
    %644 = vmatprep.subr.mxu0 0.0
    %645 = vmatpush1.xpose.msra.mxu0 0.0
    %646 = vmatprep.subr.mxu0 0.0
    %647 = vmatpush1.xpose.msra.mxu0 0.0
    %648 = vmatprep.subr.mxu0 0.0
    %649 = vmatpush1.xpose.msra.mxu0 0.0
    %650 = vmatprep.subr.mxu0 0.0
    %651 = vmatpush1.xpose.msra.mxu0 0.0
    %652 = vmatprep.subr.mxu0 0.0
    %653 = vmatpush1.xpose.msra.mxu0 0.0
    %654 = vmatprep.subr.mxu0 0.0
    %655 = vmatpush1.xpose.msra.mxu0 0.0
    %656 = vmatprep.subr.mxu0 0.0
    %657 = vmatpush1.xpose.msra.mxu0 0.0
    %658 = vmatprep.subr.mxu0 0.0
    %659 = vmatpush1.xpose.msra.mxu0 0.0
    %660 = vmatprep.subr.mxu0 0.0
    %661 = vmatpush1.xpose.msra.mxu0 0.0
    %662 = vmatprep.subr.mxu0 0.0
    %663 = vmatpush1.xpose.msra.mxu0 0.0
    %664 = vmatprep.subr.mxu0 0.0
    %665 = vmatpush1.xpose.msra.mxu0 0.0
    %666 = vmatprep.subr.mxu0 0.0
    %667 = vmatpush1.xpose.msra.mxu0 0.0
    %668 = vmatprep.subr.mxu0 0.0
    %669 = vmatpush1.xpose.msra.mxu0 0.0
    %670 = vmatprep.subr.mxu0 0.0
    %671 = vmatpush1.xpose.msra.mxu0 0.0
    %672 = vmatprep.subr.mxu0 0.0
    %673 = vmatpush1.xpose.msra.mxu0 0.0
    %674 = vmatprep.subr.mxu0 0.0
    %675 = vmatpush1.xpose.msra.mxu0 0.0
    %676 = vmatprep.subr.mxu0 0.0
    %677 = vmatpush1.xpose.msra.mxu0 0.0
    %678 = vmatprep.subr.mxu0 0.0
    %679 = vmatpush1.xpose.msra.mxu0 0.0
    %680 = vmatprep.mubr.f32.mxu0 0.0
    %681 = vmatmul.mubr.f32.gmra.mrb[0].mxu0 %v608
    %v682 = vpop.f32.mrb[0].mxu0
    %v683 = vadd.f32 0.0, %v682
    %v684 = vpop.f32.mrb[0].mxu0
    %685 = vdwg.mxu0
    %vm686 = vcmask 122880
    %687 = vst.msk [vmem:[#allocation15] sm:$0x1] %vm686, %v683
    %s688 = sadd.s32 %s139, 1
    %s689 = sld [smem:[#allocation4 + %s688]]
    %s690 = sld [smem:[#allocation5 + %s688]]
    %s691 = scalar_lea.vmem [#allocation9], 16
    %v692 = vld [vmem:[%s691] sm:$0xff]
    %v693 = vld [vmem:[%s691 + $0x8] sm:$0xff]
    %v694 = vstv %s690
    %vm695 = vcmp.eq.s32.totalorder %v137, %v694
    %vm696 = vcmp.eq.s32.totalorder %v138, %v694
    %v697 = vsel %vm695, 1, 0
    %v698 = vsel %vm696, 1, 0
    %v699 = vcvt.s32.f32 %v697
    %v700 = vcvt.s32.f32 %v698
    %v701 = vmul.f32 %v699, %v155
    %v702 = vmul.f32 %v700, %v155
    %v703 = vadd.f32 %v114, %v701
    %v704 = vadd.f32 %v115, %v702
    %v705 = vmax.f32 %v703, 0.0
    %v706 = vmax.f32 %v704, 0.0
    %v708 = vsel %vm163, %v692, 0
    %v711 = vsel %vm163, %v693, 0
    %713 = vmatprep.subr.mxu0 0.0
    %714 = vmatpush1.msra.mxu0 %v705
    %715 = vmatprep.subr.mxu0 0.0
    %716 = vmatpush1.msra.mxu0 %v706
    %717 = vmatprep.subr.mxu0 0.0
    %718 = vmatpush1.msra.mxu0 0.0
    %719 = vmatprep.subr.mxu0 0.0
    %720 = vmatpush1.msra.mxu0 0.0
    %721 = vmatprep.subr.mxu0 0.0
    %722 = vmatpush1.msra.mxu0 0.0
    %723 = vmatprep.subr.mxu0 0.0
    %724 = vmatpush1.msra.mxu0 0.0
    %725 = vmatprep.subr.mxu0 0.0
    %726 = vmatpush1.msra.mxu0 0.0
    %727 = vmatprep.subr.mxu0 0.0
    %728 = vmatpush1.msra.mxu0 0.0
    %729 = vmatprep.subr.mxu0 0.0
    %730 = vmatpush1.msra.mxu0 0.0
    %731 = vmatprep.subr.mxu0 0.0
    %732 = vmatpush1.msra.mxu0 0.0
    %733 = vmatprep.subr.mxu0 0.0
    %734 = vmatpush1.msra.mxu0 0.0
    %735 = vmatprep.subr.mxu0 0.0
    %736 = vmatpush1.msra.mxu0 0.0
    %737 = vmatprep.subr.mxu0 0.0
    %738 = vmatpush1.msra.mxu0 0.0
    %739 = vmatprep.subr.mxu0 0.0
    %740 = vmatpush1.msra.mxu0 0.0
    %741 = vmatprep.subr.mxu0 0.0
    %742 = vmatpush1.msra.mxu0 0.0
    %743 = vmatprep.subr.mxu0 0.0
    %744 = vmatpush1.msra.mxu0 0.0
    %745 = vmatprep.subr.mxu0 0.0
    %746 = vmatpush1.msra.mxu0 0.0
    %747 = vmatprep.subr.mxu0 0.0
    %748 = vmatpush1.msra.mxu0 0.0
    %749 = vmatprep.subr.mxu0 0.0
    %750 = vmatpush1.msra.mxu0 0.0
    %751 = vmatprep.subr.mxu0 0.0
    %752 = vmatpush1.msra.mxu0 0.0
    %753 = vmatprep.subr.mxu0 0.0
    %754 = vmatpush1.msra.mxu0 0.0
    %755 = vmatprep.subr.mxu0 0.0
    %756 = vmatpush1.msra.mxu0 0.0
    %757 = vmatprep.subr.mxu0 0.0
    %758 = vmatpush1.msra.mxu0 0.0
    %759 = vmatprep.subr.mxu0 0.0
    %760 = vmatpush1.msra.mxu0 0.0
    %761 = vmatprep.subr.mxu0 0.0
    %762 = vmatpush1.msra.mxu0 0.0
    %763 = vmatprep.subr.mxu0 0.0
    %764 = vmatpush1.msra.mxu0 0.0
    %765 = vmatprep.subr.mxu0 0.0
    %766 = vmatpush1.msra.mxu0 0.0
    %767 = vmatprep.subr.mxu0 0.0
    %768 = vmatpush1.msra.mxu0 0.0
    %769 = vmatprep.subr.mxu0 0.0
    %770 = vmatpush1.msra.mxu0 0.0
    %771 = vmatprep.subr.mxu0 0.0
    %772 = vmatpush1.msra.mxu0 0.0
    %773 = vmatprep.subr.mxu0 0.0
    %774 = vmatpush1.msra.mxu0 0.0
    %775 = vmatprep.subr.mxu0 0.0
    %776 = vmatpush1.msra.mxu0 0.0
    %777 = vmatprep.mubr.f32.mxu0 0.0
    %778 = vmatmul.mubr.f32.gmra.mrb[0].mxu0 %v708
    %v779 = vpop.f32.mrb[0].mxu0
    %v780 = vadd.f32 0.0, %v779
    %v781 = vpop.f32.mrb[0].mxu0
    %782 = vmatprep.mubr.f32.mxu0 0.0
    %783 = vmatmul.mubr.f32.gmra.mrb[0].mxu0 %v711
    %v784 = vpop.f32.mrb[0].mxu0
    %v785 = vadd.f32 0.0, %v784
    %v786 = vpop.f32.mrb[0].mxu0
    %787 = vdwg.mxu0
    %v789 = vsel %vm251, %v780, 0
    %v792 = vsel %vm251, %v785, 0
    %794 = vmatprep.subr.mxu0 0.0
    %795 = vmatpush1.msra.mxu0 %v117
    %796 = vmatprep.subr.mxu0 0.0
    %797 = vmatpush1.msra.mxu0 %v118
    %798 = vmatprep.subr.mxu0 0.0
    %799 = vmatpush1.msra.mxu0 %v119
    %800 = vmatprep.subr.mxu0 0.0
    %801 = vmatpush1.msra.mxu0 %v120
    %802 = vmatprep.subr.mxu0 0.0
    %803 = vmatpush1.msra.mxu0 0.0
    %804 = vmatprep.subr.mxu0 0.0
    %805 = vmatpush1.msra.mxu0 0.0
    %806 = vmatprep.subr.mxu0 0.0
    %807 = vmatpush1.msra.mxu0 0.0
    %808 = vmatprep.subr.mxu0 0.0
    %809 = vmatpush1.msra.mxu0 0.0
    %810 = vmatprep.subr.mxu0 0.0
    %811 = vmatpush1.msra.mxu0 0.0
    %812 = vmatprep.subr.mxu0 0.0
    %813 = vmatpush1.msra.mxu0 0.0
    %814 = vmatprep.subr.mxu0 0.0
    %815 = vmatpush1.msra.mxu0 0.0
    %816 = vmatprep.subr.mxu0 0.0
    %817 = vmatpush1.msra.mxu0 0.0
    %818 = vmatprep.subr.mxu0 0.0
    %819 = vmatpush1.msra.mxu0 0.0
    %820 = vmatprep.subr.mxu0 0.0
    %821 = vmatpush1.msra.mxu0 0.0
    %822 = vmatprep.subr.mxu0 0.0
    %823 = vmatpush1.msra.mxu0 0.0
    %824 = vmatprep.subr.mxu0 0.0
    %825 = vmatpush1.msra.mxu0 0.0
    %826 = vmatprep.subr.mxu0 0.0
    %827 = vmatpush1.msra.mxu0 0.0
    %828 = vmatprep.subr.mxu0 0.0
    %829 = vmatpush1.msra.mxu0 0.0
    %830 = vmatprep.subr.mxu0 0.0
    %831 = vmatpush1.msra.mxu0 0.0
    %832 = vmatprep.subr.mxu0 0.0
    %833 = vmatpush1.msra.mxu0 0.0
    %834 = vmatprep.subr.mxu0 0.0
    %835 = vmatpush1.msra.mxu0 0.0
    %836 = vmatprep.subr.mxu0 0.0
    %837 = vmatpush1.msra.mxu0 0.0
    %838 = vmatprep.subr.mxu0 0.0
    %839 = vmatpush1.msra.mxu0 0.0
    %840 = vmatprep.subr.mxu0 0.0
    %841 = vmatpush1.msra.mxu0 0.0
    %842 = vmatprep.subr.mxu0 0.0
    %843 = vmatpush1.msra.mxu0 0.0
    %844 = vmatprep.subr.mxu0 0.0
    %845 = vmatpush1.msra.mxu0 0.0
    %846 = vmatprep.subr.mxu0 0.0
    %847 = vmatpush1.msra.mxu0 0.0
    %848 = vmatprep.subr.mxu0 0.0
    %849 = vmatpush1.msra.mxu0 0.0
    %850 = vmatprep.subr.mxu0 0.0
    %851 = vmatpush1.msra.mxu0 0.0
    %852 = vmatprep.subr.mxu0 0.0
    %853 = vmatpush1.msra.mxu0 0.0
    %854 = vmatprep.subr.mxu0 0.0
    %855 = vmatpush1.msra.mxu0 0.0
    %856 = vmatprep.subr.mxu0 0.0
    %857 = vmatpush1.msra.mxu0 0.0
    %858 = vmatprep.mubr.f32.mxu0 0.0
    %859 = vmatmul.mubr.f32.gmra.mrb[0].mxu0 %v789
    %v860 = vpop.f32.mrb[0].mxu0
    %v861 = vadd.f32 %v249, %v860
    %v862 = vpop.f32.mrb[0].mxu0
    %863 = vmatprep.mubr.f32.mxu0 0.0
    %864 = vmatmul.mubr.f32.gmra.mrb[0].mxu0 %v792
    %v865 = vpop.f32.mrb[0].mxu0
    %v866 = vadd.f32 %v249, %v865
    %v867 = vpop.f32.mrb[0].mxu0
    %868 = vdwg.mxu0
    %v869 = vadd.f32 %v861, %v703
    %v870 = vadd.f32 %v866, %v704
    %v871 = vmax.f32 %v869, 0.0
    %v872 = vmax.f32 %v870, 0.0
    %873 = vst.msk [vmem:[#allocation2] sm:$0xff] %vm251, %v871
    %874 = vst.msk [vmem:[#allocation2 + $0x8] sm:$0xff] %vm251, %v872
    %s875 = scalar_lea.vmem [#allocation2], %s689
    %v876 = vld [vmem:[%s875] sm:$0x1]
    %v877 = vsel %vm251, %v871, 0.0
    %v878 = vsel %vm251, %v872, 0.0
    %v879 = vadd.f32 %v877, %v878
    %v880 = vrot.slane %v879, 4
    %v881 = vadd.f32 %v879, %v880
    %v882 = vrot.slane %v881, 2
    %v883 = vadd.f32 %v881, %v882
    %v884 = vrot.slane %v883, 1
    %v885 = vadd.f32 %v883, %v884
    %v886 = vmul.f32 %v885, %v350
    %v888 = vsel %vm251, %v886, 0
    %890 = vmatprep.subr.mxu0 0.0
    %891 = vmatpush1.msra.mxu0 %v126
    %892 = vmatprep.subr.mxu0 0.0
    %893 = vmatpush1.msra.mxu0 %v127
    %894 = vmatprep.subr.mxu0 0.0
    %895 = vmatpush1.msra.mxu0 %v128
    %896 = vmatprep.subr.mxu0 0.0
    %897 = vmatpush1.msra.mxu0 %v129
    %898 = vmatprep.subr.mxu0 0.0
    %899 = vmatpush1.msra.mxu0 0.0
    %900 = vmatprep.subr.mxu0 0.0
    %901 = vmatpush1.msra.mxu0 0.0
    %902 = vmatprep.subr.mxu0 0.0
    %903 = vmatpush1.msra.mxu0 0.0
    %904 = vmatprep.subr.mxu0 0.0
    %905 = vmatpush1.msra.mxu0 0.0
    %906 = vmatprep.subr.mxu0 0.0
    %907 = vmatpush1.msra.mxu0 0.0
    %908 = vmatprep.subr.mxu0 0.0
    %909 = vmatpush1.msra.mxu0 0.0
    %910 = vmatprep.subr.mxu0 0.0
    %911 = vmatpush1.msra.mxu0 0.0
    %912 = vmatprep.subr.mxu0 0.0
    %913 = vmatpush1.msra.mxu0 0.0
    %914 = vmatprep.subr.mxu0 0.0
    %915 = vmatpush1.msra.mxu0 0.0
    %916 = vmatprep.subr.mxu0 0.0
    %917 = vmatpush1.msra.mxu0 0.0
    %918 = vmatprep.subr.mxu0 0.0
    %919 = vmatpush1.msra.mxu0 0.0
    %920 = vmatprep.subr.mxu0 0.0
    %921 = vmatpush1.msra.mxu0 0.0
    %922 = vmatprep.subr.mxu0 0.0
    %923 = vmatpush1.msra.mxu0 0.0
    %924 = vmatprep.subr.mxu0 0.0
    %925 = vmatpush1.msra.mxu0 0.0
    %926 = vmatprep.subr.mxu0 0.0
    %927 = vmatpush1.msra.mxu0 0.0
    %928 = vmatprep.subr.mxu0 0.0
    %929 = vmatpush1.msra.mxu0 0.0
    %930 = vmatprep.subr.mxu0 0.0
    %931 = vmatpush1.msra.mxu0 0.0
    %932 = vmatprep.subr.mxu0 0.0
    %933 = vmatpush1.msra.mxu0 0.0
    %934 = vmatprep.subr.mxu0 0.0
    %935 = vmatpush1.msra.mxu0 0.0
    %936 = vmatprep.subr.mxu0 0.0
    %937 = vmatpush1.msra.mxu0 0.0
    %938 = vmatprep.subr.mxu0 0.0
    %939 = vmatpush1.msra.mxu0 0.0
    %940 = vmatprep.subr.mxu0 0.0
    %941 = vmatpush1.msra.mxu0 0.0
    %942 = vmatprep.subr.mxu0 0.0
    %943 = vmatpush1.msra.mxu0 0.0
    %944 = vmatprep.subr.mxu0 0.0
    %945 = vmatpush1.msra.mxu0 0.0
    %946 = vmatprep.subr.mxu0 0.0
    %947 = vmatpush1.msra.mxu0 0.0
    %948 = vmatprep.subr.mxu0 0.0
    %949 = vmatpush1.msra.mxu0 0.0
    %950 = vmatprep.subr.mxu0 0.0
    %951 = vmatpush1.msra.mxu0 0.0
    %952 = vmatprep.subr.mxu0 0.0
    %953 = vmatpush1.msra.mxu0 0.0
    %954 = vmatprep.mubr.f32.mxu0 0.0
    %955 = vmatmul.mubr.f32.gmra.mrb[0].mxu0 %v888
    %v956 = vpop.f32.mrb[0].mxu0
    %v957 = vadd.f32 0.0, %v956
    %v958 = vpop.f32.mrb[0].mxu0
    %959 = vdwg.mxu0
    %v960 = vlaneseq
    %v961 = vshrl.u32 %v960, 7
    %v962 = vsub.s32 0, %v961
    %v963 = vrot.slane %v957, %v962
    %v965 = vsel %vm251, %v871, 0
    %v968 = vsel %vm251, %v872, 0
    %970 = vmatprep.subr.mxu0 0.0
    %971 = vmatpush1.msra.mxu0 %v122
    %972 = vmatprep.subr.mxu0 0.0
    %973 = vmatpush1.msra.mxu0 %v123
    %974 = vmatprep.subr.mxu0 0.0
    %975 = vmatpush1.msra.mxu0 %v124
    %976 = vmatprep.subr.mxu0 0.0
    %977 = vmatpush1.msra.mxu0 %v125
    %978 = vmatprep.subr.mxu0 0.0
    %979 = vmatpush1.msra.mxu0 0.0
    %980 = vmatprep.subr.mxu0 0.0
    %981 = vmatpush1.msra.mxu0 0.0
    %982 = vmatprep.subr.mxu0 0.0
    %983 = vmatpush1.msra.mxu0 0.0
    %984 = vmatprep.subr.mxu0 0.0
    %985 = vmatpush1.msra.mxu0 0.0
    %986 = vmatprep.subr.mxu0 0.0
    %987 = vmatpush1.msra.mxu0 0.0
    %988 = vmatprep.subr.mxu0 0.0
    %989 = vmatpush1.msra.mxu0 0.0
    %990 = vmatprep.subr.mxu0 0.0
    %991 = vmatpush1.msra.mxu0 0.0
    %992 = vmatprep.subr.mxu0 0.0
    %993 = vmatpush1.msra.mxu0 0.0
    %994 = vmatprep.subr.mxu0 0.0
    %995 = vmatpush1.msra.mxu0 0.0
    %996 = vmatprep.subr.mxu0 0.0
    %997 = vmatpush1.msra.mxu0 0.0
    %998 = vmatprep.subr.mxu0 0.0
    %999 = vmatpush1.msra.mxu0 0.0
    %1000 = vmatprep.subr.mxu0 0.0
    %1001 = vmatpush1.msra.mxu0 0.0
    %1002 = vmatprep.subr.mxu0 0.0
    %1003 = vmatpush1.msra.mxu0 0.0
    %1004 = vmatprep.subr.mxu0 0.0
    %1005 = vmatpush1.msra.mxu0 0.0
    %1006 = vmatprep.subr.mxu0 0.0
    %1007 = vmatpush1.msra.mxu0 0.0
    %1008 = vmatprep.subr.mxu0 0.0
    %1009 = vmatpush1.msra.mxu0 0.0
    %1010 = vmatprep.subr.mxu0 0.0
    %1011 = vmatpush1.msra.mxu0 0.0
    %1012 = vmatprep.subr.mxu0 0.0
    %1013 = vmatpush1.msra.mxu0 0.0
    %1014 = vmatprep.subr.mxu0 0.0
    %1015 = vmatpush1.msra.mxu0 0.0
    %1016 = vmatprep.subr.mxu0 0.0
    %1017 = vmatpush1.msra.mxu0 0.0
    %1018 = vmatprep.subr.mxu0 0.0
    %1019 = vmatpush1.msra.mxu0 0.0
    %1020 = vmatprep.subr.mxu0 0.0
    %1021 = vmatpush1.msra.mxu0 0.0
    %1022 = vmatprep.subr.mxu0 0.0
    %1023 = vmatpush1.msra.mxu0 0.0
    %1024 = vmatprep.subr.mxu0 0.0
    %1025 = vmatpush1.msra.mxu0 0.0
    %1026 = vmatprep.subr.mxu0 0.0
    %1027 = vmatpush1.msra.mxu0 0.0
    %1028 = vmatprep.subr.mxu0 0.0
    %1029 = vmatpush1.msra.mxu0 0.0
    %1030 = vmatprep.subr.mxu0 0.0
    %1031 = vmatpush1.msra.mxu0 0.0
    %1032 = vmatprep.subr.mxu0 0.0
    %1033 = vmatpush1.msra.mxu0 0.0
    %1034 = vmatprep.mubr.f32.mxu0 0.0
    %1035 = vmatmul.mubr.f32.gmra.mrb[0].mxu0 %v965
    %v1036 = vpop.f32.mrb[0].mxu0
    %v1037 = vadd.f32 %v963, %v1036
    %v1038 = vpop.f32.mrb[0].mxu0
    %1039 = vmatprep.mubr.f32.mxu0 0.0
    %1040 = vmatmul.mubr.f32.gmra.mrb[0].mxu0 %v968
    %v1041 = vpop.f32.mrb[0].mxu0
    %v1042 = vadd.f32 %v963, %v1041
    %v1043 = vpop.f32.mrb[0].mxu0
    %1044 = vdwg.mxu0
    %v1045 = vadd.f32 %v1037, %v514
    %v1046 = vadd.f32 %v1042, %v514
    %v1047 = vmax.f32 %v1045, 0.0
    %v1048 = vmax.f32 %v1046, 0.0
    %v1050 = vsel %vm251, %v1047, 0
    %v1053 = vsel %vm251, %v1048, 0
    %1055 = vmatprep.subr.mxu0 0.0
    %1056 = vmatpush1.msra.mxu0 %v131
    %1057 = vmatprep.subr.mxu0 0.0
    %1058 = vmatpush1.msra.mxu0 %v132
    %1059 = vmatprep.subr.mxu0 0.0
    %1060 = vmatpush1.msra.mxu0 %v133
    %1061 = vmatprep.subr.mxu0 0.0
    %1062 = vmatpush1.msra.mxu0 %v134
    %1063 = vmatprep.subr.mxu0 0.0
    %1064 = vmatpush1.msra.mxu0 0.0
    %1065 = vmatprep.subr.mxu0 0.0
    %1066 = vmatpush1.msra.mxu0 0.0
    %1067 = vmatprep.subr.mxu0 0.0
    %1068 = vmatpush1.msra.mxu0 0.0
    %1069 = vmatprep.subr.mxu0 0.0
    %1070 = vmatpush1.msra.mxu0 0.0
    %1071 = vmatprep.subr.mxu0 0.0
    %1072 = vmatpush1.msra.mxu0 0.0
    %1073 = vmatprep.subr.mxu0 0.0
    %1074 = vmatpush1.msra.mxu0 0.0
    %1075 = vmatprep.subr.mxu0 0.0
    %1076 = vmatpush1.msra.mxu0 0.0
    %1077 = vmatprep.subr.mxu0 0.0
    %1078 = vmatpush1.msra.mxu0 0.0
    %1079 = vmatprep.subr.mxu0 0.0
    %1080 = vmatpush1.msra.mxu0 0.0
    %1081 = vmatprep.subr.mxu0 0.0
    %1082 = vmatpush1.msra.mxu0 0.0
    %1083 = vmatprep.subr.mxu0 0.0
    %1084 = vmatpush1.msra.mxu0 0.0
    %1085 = vmatprep.subr.mxu0 0.0
    %1086 = vmatpush1.msra.mxu0 0.0
    %1087 = vmatprep.subr.mxu0 0.0
    %1088 = vmatpush1.msra.mxu0 0.0
    %1089 = vmatprep.subr.mxu0 0.0
    %1090 = vmatpush1.msra.mxu0 0.0
    %1091 = vmatprep.subr.mxu0 0.0
    %1092 = vmatpush1.msra.mxu0 0.0
    %1093 = vmatprep.subr.mxu0 0.0
    %1094 = vmatpush1.msra.mxu0 0.0
    %1095 = vmatprep.subr.mxu0 0.0
    %1096 = vmatpush1.msra.mxu0 0.0
    %1097 = vmatprep.subr.mxu0 0.0
    %1098 = vmatpush1.msra.mxu0 0.0
    %1099 = vmatprep.subr.mxu0 0.0
    %1100 = vmatpush1.msra.mxu0 0.0
    %1101 = vmatprep.subr.mxu0 0.0
    %1102 = vmatpush1.msra.mxu0 0.0
    %1103 = vmatprep.subr.mxu0 0.0
    %1104 = vmatpush1.msra.mxu0 0.0
    %1105 = vmatprep.subr.mxu0 0.0
    %1106 = vmatpush1.msra.mxu0 0.0
    %1107 = vmatprep.subr.mxu0 0.0
    %1108 = vmatpush1.msra.mxu0 0.0
    %1109 = vmatprep.subr.mxu0 0.0
    %1110 = vmatpush1.msra.mxu0 0.0
    %1111 = vmatprep.subr.mxu0 0.0
    %1112 = vmatpush1.msra.mxu0 0.0
    %1113 = vmatprep.subr.mxu0 0.0
    %1114 = vmatpush1.msra.mxu0 0.0
    %1115 = vmatprep.subr.mxu0 0.0
    %1116 = vmatpush1.msra.mxu0 0.0
    %1117 = vmatprep.subr.mxu0 0.0
    %1118 = vmatpush1.msra.mxu0 0.0
    %1119 = vmatprep.mubr.f32.mxu0 0.0
    %1120 = vmatmul.mubr.f32.gmra.mrb[0].mxu0 %v1050
    %v1121 = vpop.f32.mrb[0].mxu0
    %v1122 = vadd.f32 %v524, %v1121
    %v1123 = vpop.f32.mrb[0].mxu0
    %1124 = vmatprep.mubr.f32.mxu0 0.0
    %1125 = vmatmul.mubr.f32.gmra.mrb[0].mxu0 %v1053
    %v1126 = vpop.f32.mrb[0].mxu0
    %v1127 = vadd.f32 %v524, %v1126
    %v1128 = vpop.f32.mrb[0].mxu0
    %1129 = vdwg.mxu0
    %v1131 = vsel %vm251, %v876, 0
    %v1134 = vsel %vm251, %v1122, 0
    %v1137 = vsel %vm251, %v1127, 0
    %1139 = vmatprep.subr.mxu0 0.0
    %1140 = vmatpush1.xpose.msra.mxu0 %v1134
    %1141 = vmatprep.subr.mxu0 0.0
    %1142 = vmatpush1.xpose.msra.mxu0 %v1137
    %1143 = vmatprep.subr.mxu0 0.0
    %1144 = vmatpush1.xpose.msra.mxu0 0.0
    %1145 = vmatprep.subr.mxu0 0.0
    %1146 = vmatpush1.xpose.msra.mxu0 0.0
    %1147 = vmatprep.subr.mxu0 0.0
    %1148 = vmatpush1.xpose.msra.mxu0 0.0
    %1149 = vmatprep.subr.mxu0 0.0
    %1150 = vmatpush1.xpose.msra.mxu0 0.0
    %1151 = vmatprep.subr.mxu0 0.0
    %1152 = vmatpush1.xpose.msra.mxu0 0.0
    %1153 = vmatprep.subr.mxu0 0.0
    %1154 = vmatpush1.xpose.msra.mxu0 0.0
    %1155 = vmatprep.subr.mxu0 0.0
    %1156 = vmatpush1.xpose.msra.mxu0 0.0
    %1157 = vmatprep.subr.mxu0 0.0
    %1158 = vmatpush1.xpose.msra.mxu0 0.0
    %1159 = vmatprep.subr.mxu0 0.0
    %1160 = vmatpush1.xpose.msra.mxu0 0.0
    %1161 = vmatprep.subr.mxu0 0.0
    %1162 = vmatpush1.xpose.msra.mxu0 0.0
    %1163 = vmatprep.subr.mxu0 0.0
    %1164 = vmatpush1.xpose.msra.mxu0 0.0
    %1165 = vmatprep.subr.mxu0 0.0
    %1166 = vmatpush1.xpose.msra.mxu0 0.0
    %1167 = vmatprep.subr.mxu0 0.0
    %1168 = vmatpush1.xpose.msra.mxu0 0.0
    %1169 = vmatprep.subr.mxu0 0.0
    %1170 = vmatpush1.xpose.msra.mxu0 0.0
    %1171 = vmatprep.subr.mxu0 0.0
    %1172 = vmatpush1.xpose.msra.mxu0 0.0
    %1173 = vmatprep.subr.mxu0 0.0
    %1174 = vmatpush1.xpose.msra.mxu0 0.0
    %1175 = vmatprep.subr.mxu0 0.0
    %1176 = vmatpush1.xpose.msra.mxu0 0.0
    %1177 = vmatprep.subr.mxu0 0.0
    %1178 = vmatpush1.xpose.msra.mxu0 0.0
    %1179 = vmatprep.subr.mxu0 0.0
    %1180 = vmatpush1.xpose.msra.mxu0 0.0
    %1181 = vmatprep.subr.mxu0 0.0
    %1182 = vmatpush1.xpose.msra.mxu0 0.0
    %1183 = vmatprep.subr.mxu0 0.0
    %1184 = vmatpush1.xpose.msra.mxu0 0.0
    %1185 = vmatprep.subr.mxu0 0.0
    %1186 = vmatpush1.xpose.msra.mxu0 0.0
    %1187 = vmatprep.subr.mxu0 0.0
    %1188 = vmatpush1.xpose.msra.mxu0 0.0
    %1189 = vmatprep.subr.mxu0 0.0
    %1190 = vmatpush1.xpose.msra.mxu0 0.0
    %1191 = vmatprep.subr.mxu0 0.0
    %1192 = vmatpush1.xpose.msra.mxu0 0.0
    %1193 = vmatprep.subr.mxu0 0.0
    %1194 = vmatpush1.xpose.msra.mxu0 0.0
    %1195 = vmatprep.subr.mxu0 0.0
    %1196 = vmatpush1.xpose.msra.mxu0 0.0
    %1197 = vmatprep.subr.mxu0 0.0
    %1198 = vmatpush1.xpose.msra.mxu0 0.0
    %1199 = vmatprep.subr.mxu0 0.0
    %1200 = vmatpush1.xpose.msra.mxu0 0.0
    %1201 = vmatprep.subr.mxu0 0.0
    %1202 = vmatpush1.xpose.msra.mxu0 0.0
    %1203 = vmatprep.mubr.f32.mxu0 0.0
    %1204 = vmatmul.mubr.f32.gmra.mrb[0].mxu0 %v1131
    %v1205 = vpop.f32.mrb[0].mxu0
    %v1206 = vadd.f32 0.0, %v1205
    %v1207 = vpop.f32.mrb[0].mxu0
    %1208 = vdwg.mxu0
    %s1209 = scalar_lea.vmem [#allocation15], 1
    %1210 = vst.msk [vmem:[%s1209] sm:$0x1] %vm686, %v1206
    // Predicated region
    $region62: #{tpu_custom_call.1} parent=1 // pred_check
      _
    $region63: #{tpu_custom_call.1} parent=1 // pred_check_branch
      %1212 = sbr.rel (0) target = $region65
    $region64: #{tpu_custom_call.1} parent=1 // pred_region
      %s1214 = ssub.s32 32, 32
      %1215 = vsyncadd [#allocation8], %s1214
      %s1216 = sshll.u32 [#allocation15], 4
      %s1217 = int_to_ptr.vmem [resolvable:$true] %s1216
      %1222 = dma.vmem_to_hbm [thread:$0]  %s1217, 32, %s12, [#allocation8], 16, 16, 1
    $region65: #{tpu_custom_call.1} parent=1 // pred_fallthru
      _
    // Predicated region
    $region66: #{tpu_custom_call.1} parent=1 // pred_check
      _
    $region67: #{tpu_custom_call.1} parent=1 // pred_check_branch
      %1224 = sbr.rel (0) target = $region69
    $region68: #{tpu_custom_call.1} parent=1 // pred_region
      %1225 = dma.done [#allocation8], 32
    $region69: #{tpu_custom_call.1} parent=1 // pred_fallthru
      _
    %1226 = vsyncpa [#allocation7], 1
    %1227 = vsyncpa [#allocation10], 1
    %1228 = vsyncpa [#allocation13], 1
    %1229 = vsyncpa [#allocation8], 1

</llo_original>
